<compile_context>
chip_gen: v6e
topology: v6e:2x2x1
jax: 0.10.0
libtpu: 0.0.40
codegen_flags: <defaults>
</compile_context>

<pallas_src>
import functools

import jax
import jax.numpy as jnp
from jax.experimental import pallas as pl
from jax.experimental.pallas import tpu as pltpu


# ----------------------------------------------------------------------------
# Pallas kernel
# ----------------------------------------------------------------------------
def _encoder_kernel(pc_ref,
                    w1, b1, w2, b2, w3, b3, w4, b4,
                    out_ref, max_sc,
                    *, n_points, tn, n_tiles, ragged):
    j = pl.program_id(2)

    @pl.when(j == 0)
    def _init():
        max_sc[...] = jnp.full_like(max_sc, -jnp.inf)

    # Channel-major, lane-dense input tile: (8, tn) f32; channels 3..7 are 0.
    x = pc_ref[0].astype(w1.dtype)

    # Layer 1: zero-padded K=8 MXU matmul (channel-major); bias + ReLU in f32,
    # bf16 downcast fused into the epilogue.
    h = jnp.dot(w1[...], x, preferred_element_type=jnp.float32)           # (64, tn)
    h = jnp.maximum(h + b1[...], 0.0).astype(w2.dtype)

    # Layers 2-4: channel-major bf16 MXU matmuls with f32 accumulation.
    h = jnp.maximum(jnp.dot(w2[...], h, preferred_element_type=jnp.float32)
                    + b2[...], 0.0).astype(w3.dtype)                      # (128, tn)
    h = jnp.maximum(jnp.dot(w3[...], h, preferred_element_type=jnp.float32)
                    + b3[...], 0.0).astype(w4.dtype)                      # (128, tn)
    h = jnp.maximum(jnp.dot(w4[...], h, preferred_element_type=jnp.float32)
                    + b4[...], 0.0)                                       # (F, tn) f32

    if ragged:
        # Padded points must never win the max-pool: mask them to -inf.
        base = (pl.program_id(1) * n_tiles + j) * tn
        pos = base + jax.lax.broadcasted_iota(jnp.int32, h.shape, 1)
        h = jnp.where(pos < n_points, h, -jnp.inf)

    # Pure-VPU reduction over 128-lane groups into a lane-dense (F, 128)
    # partial max; the cross-lane reduce is deferred to the wrapper.
    part = h[:, 0:128]
    for g in range(1, tn // 128):
        part = jnp.maximum(part, h[:, g * 128:(g + 1) * 128])
    max_sc[...] = jnp.maximum(max_sc[...], part)

    @pl.when(j == pl.num_programs(2) - 1)
    def _finalize():
        out_ref[0, 0] = max_sc[...]      # whole (F, 128) block written


# ----------------------------------------------------------------------------
# Tiling / VMEM budgeting
# ----------------------------------------------------------------------------
def _round_up(x, m):
    return ((x + m - 1) // m) * m


def _choose_tiling(N, tile_n, num_splits):
    """Pick (S, tn, n_tiles) with tn a multiple of 128.  Points are padded to
    S * n_tiles * tn; the padding is masked to -inf inside the kernel."""
    S = max(1, int(num_splits))
    per_split = _round_up(max(1, -(-N // S)), 128)
    tn = min(_round_up(max(128, int(tile_n)), 128), per_split)
    n_tiles = -(-per_split // tn)
    return S, tn, n_tiles


def _vmem_limit_bytes(tn, feat):
    # Generous upper bound: double-buffered input tile, all inter-layer
    # activations as f32, double-buffered resident weights, scratch; x2 margin.
    est = 4 * (2 * 8 * tn
               + tn * (64 + 128 + 128 + feat)
               + 2 * (64 * 8 + 128 * 64 + 128 * 128 + feat * 128)
               + 4 * feat * 128)
    return int(min(max(2 * est, 32 * 1024 * 1024), 48 * 1024 * 1024))


# ----------------------------------------------------------------------------
# Wrapper
# ----------------------------------------------------------------------------
def simple_pc_encoder(pc, folded, *, tile_n=4096, num_splits=1, use_bf16=True):
    """pc: (B, N, 3) float32; folded: dict of BN-folded params (point-major)."""
    B, N, C = pc.shape
    assert C == 3
    F = folded["wmu_t"].shape[0]

    S, tn, n_tiles = _choose_tiling(N, tile_n, num_splits)
    N_pad = S * n_tiles * tn
    ragged = (N_pad != N)

    # Channel-major, channel-padded (3 -> 8), point-padded copy of the cloud.
    pc_cm = jnp.transpose(pc, (0, 2, 1))                              # (B, 3, N)
    pc_cm = jnp.pad(pc_cm, ((0, 0), (0, 5), (0, N_pad - N)))          # (B, 8, N_pad)

    mm = jnp.bfloat16 if use_bf16 else jnp.float32
    # Channel-major weights (Cout, Cin); biases as (Cout, 1) columns.
    w1 = jnp.pad(folded["w1"].T, ((0, 0), (0, 5))).astype(mm)         # (64, 8)
    b1 = folded["b1"].reshape(-1, 1).astype(jnp.float32)
    w2 = folded["w2"].T.astype(mm)
    b2 = folded["b2"].reshape(-1, 1).astype(jnp.float32)
    w3 = folded["w3"].T.astype(mm)
    b3 = folded["b3"].reshape(-1, 1).astype(jnp.float32)
    w4 = folded["w4"].T.astype(mm)                                    # (F, 128)
    b4 = folded["b4"].reshape(-1, 1).astype(jnp.float32)

    full = lambda a: pl.BlockSpec(a.shape, lambda b, s, j: (0,) * a.ndim)

    kernel = functools.partial(_encoder_kernel, n_points=N, tn=tn,
                               n_tiles=n_tiles, ragged=ragged)

    pooled_blocks = pl.pallas_call(
        kernel,
        out_shape=jax.ShapeDtypeStruct((B, S, F, 128), jnp.float32),
        grid_spec=pltpu.PrefetchScalarGridSpec(
            num_scalar_prefetch=0,
            grid=(B, S, n_tiles),
            in_specs=[
                pl.BlockSpec((1, 8, tn),
                             lambda b, s, j: (b, 0, s * n_tiles + j)),
                full(w1), full(b1),
                full(w2), full(b2),
                full(w3), full(b3),
                full(w4), full(b4),
            ],
            out_specs=pl.BlockSpec((1, 1, F, 128), lambda b, s, j: (b, s, 0, 0)),
            scratch_shapes=[pltpu.VMEM((F, 128), jnp.float32)],
        ),
        compiler_params=pltpu.CompilerParams(
            dimension_semantics=("parallel", "parallel", "arbitrary"),
            vmem_limit_bytes=_vmem_limit_bytes(tn, F)),
    )(pc_cm, w1, b1, w2, b2, w3, b3, w4, b4)

    # Cross-lane + cross-split max, then the tiny Linear(F, F) as one dense
    # f32 GEMM over the whole batch (hoisted out of the kernel).
    pooled = jnp.max(pooled_blocks, axis=(1, 3))                      # (B, F)
    return pooled @ folded["wmu_t"] + folded["bmu"]                   # (B, F)


# ----------------------------------------------------------------------------
# Deterministic parameter construction + BN folding (plain JAX glue)
# ----------------------------------------------------------------------------
def _fold_conv_bn(w, b, gamma, beta, mean, var, eps=1e-5):
    # y = gamma * (x @ w + b - mean) / sqrt(var + eps) + beta
    scale = gamma / jnp.sqrt(var + eps)           # (Cout,)
    w_f = w * scale[None, :]                      # (Cin, Cout)
    b_f = (b - mean) * scale + beta               # (Cout,)
    return w_f.astype(jnp.float32), b_f.reshape(1, -1).astype(jnp.float32)


def make_params(key, feat_len):
    dims = [(3, 64), (64, 128), (128, 128), (128, feat_len)]
    keys = jax.random.split(key, 6 * len(dims) + 2)
    folded = {}
    ki = 0
    for li, (cin, cout) in enumerate(dims, start=1):
        w = 0.1 * jax.random.normal(keys[ki], (cin, cout), jnp.float32); ki += 1
        b = 0.1 * jax.random.normal(keys[ki], (cout,), jnp.float32); ki += 1
        gamma = 1.0 + 0.1 * jax.random.normal(keys[ki], (cout,), jnp.float32); ki += 1
        beta = 0.1 * jax.random.normal(keys[ki], (cout,), jnp.float32); ki += 1
        mean = 0.05 * jax.random.normal(keys[ki], (cout,), jnp.float32); ki += 1
        var = jax.random.uniform(keys[ki], (cout,), jnp.float32, 0.5, 1.5); ki += 1
        wf, bf = _fold_conv_bn(w, b, gamma, beta, mean, var)
        folded[f"w{li}"], folded[f"b{li}"] = wf, bf
    # mlp2mu: Linear(F, F):  y = x @ W^T + b  -> store W^T directly.
    wmu = 0.1 * jax.random.normal(keys[ki], (feat_len, feat_len), jnp.float32); ki += 1
    bmu = 0.1 * jax.random.normal(keys[ki], (feat_len,), jnp.float32); ki += 1
    folded["wmu_t"] = wmu.T
    folded["bmu"] = bmu.reshape(1, -1)
    return folded


# ----------------------------------------------------------------------------
# Pure-JAX references
# ----------------------------------------------------------------------------
def reference(pc, folded):
    """Full-f32 reference of the same (BN-folded) forward."""
    h = pc
    for li in range(1, 5):
        h = jnp.maximum(h @ folded[f"w{li}"] + folded[f"b{li}"], 0.0)
    pooled = jnp.max(h, axis=1)                   # (B, F)
    return pooled @ folded["wmu_t"] + folded["bmu"]


def reference_mixed(pc, folded, use_bf16=True):
    """Reference mirroring the kernel's bf16 matmul precision (all 4 layers)."""
    mm = jnp.bfloat16 if use_bf16 else jnp.float32
    h = pc
    for li in range(1, 5):
        w = folded[f"w{li}"].astype(mm)
        d = jnp.dot(h.astype(mm), w, preferred_element_type=jnp.float32)
        h = jnp.maximum(d + folded[f"b{li}"], 0.0)
    pooled = jnp.max(h, axis=1)                   # (B, F)
    return pooled @ folded["wmu_t"] + folded["bmu"]


# ----------------------------------------------------------------------------
if __name__ == "__main__":
    B, N, FEAT = 2, 256, 32
    key = jax.random.PRNGKey(0)
    k_pc, k_par = jax.random.split(key)

    pc = jax.random.normal(k_pc, (B, N, 3), jnp.float32)   # point cloud [B, N, 3]
    folded = make_params(k_par, FEAT)

    run = jax.jit(functools.partial(simple_pc_encoder,
                                    tile_n=4096, num_splits=1, use_bf16=True))
    out = jax.block_until_ready(run(pc, folded))

    ref_mixed = reference_mixed(pc, folded)   # same matmul precision as kernel
    ref_f32 = reference(pc, folded)           # pure f32 forward

    assert out.shape == (B, FEAT)
    assert jnp.allclose(out, ref_mixed, atol=1e-2, rtol=1e-2), (
        f"max abs err vs mixed ref {jnp.max(jnp.abs(out - ref_mixed))}")
    assert jnp.allclose(out, ref_f32, atol=6e-2, rtol=6e-2), (
        f"max abs err vs f32 ref {jnp.max(jnp.abs(out - ref_f32))}")

    print("KERNEL_OK")
</pallas_src>

<mosaic_0001>
module attributes {stable_mosaic.version = 11 : i64} {
  func.func @_encoder_kernel(%arg0: i32, %arg1: i32, %arg2: i32, %arg3: memref<1x8x256xf32, #tpu.memory_space<vmem>>, %arg4: memref<64x8xbf16, #tpu.memory_space<vmem>>, %arg5: memref<64x1xf32, #tpu.memory_space<vmem>>, %arg6: memref<128x64xbf16, #tpu.memory_space<vmem>>, %arg7: memref<128x1xf32, #tpu.memory_space<vmem>>, %arg8: memref<128x128xbf16, #tpu.memory_space<vmem>>, %arg9: memref<128x1xf32, #tpu.memory_space<vmem>>, %arg10: memref<32x128xbf16, #tpu.memory_space<vmem>>, %arg11: memref<32x1xf32, #tpu.memory_space<vmem>>, %arg12: memref<1x1x32x128xf32, #tpu.memory_space<vmem>>, %arg13: memref<32x128xf32, #tpu.memory_space<vmem>>) attributes {dimension_semantics = [#tpu.dimension_semantics<parallel>, #tpu.dimension_semantics<parallel>, #tpu.dimension_semantics<arbitrary>], iteration_bounds = array<i64: 2, 1, 1>, scalar_prefetch = 0 : i64, scratch_operands = 1 : i64, tpu.core_type = #tpu.core_type<tc>, window_params = [{transform_indices = @transform_0, window_bounds = array<i64: 1, 8, 256>}, {pipeline_mode = #tpu.pipeline_mode<synchronous>, transform_indices = @transform_1, window_bounds = array<i64: 64, 8>}, {pipeline_mode = #tpu.pipeline_mode<synchronous>, transform_indices = @transform_2, window_bounds = array<i64: 64, 1>}, {pipeline_mode = #tpu.pipeline_mode<synchronous>, transform_indices = @transform_3, window_bounds = array<i64: 128, 64>}, {pipeline_mode = #tpu.pipeline_mode<synchronous>, transform_indices = @transform_4, window_bounds = array<i64: 128, 1>}, {pipeline_mode = #tpu.pipeline_mode<synchronous>, transform_indices = @transform_5, window_bounds = array<i64: 128, 128>}, {pipeline_mode = #tpu.pipeline_mode<synchronous>, transform_indices = @transform_6, window_bounds = array<i64: 128, 1>}, {pipeline_mode = #tpu.pipeline_mode<synchronous>, transform_indices = @transform_7, window_bounds = array<i64: 32, 128>}, {pipeline_mode = #tpu.pipeline_mode<synchronous>, transform_indices = @transform_8, window_bounds = array<i64: 32, 1>}, {transform_indices = @transform_9, window_bounds = array<i64: 1, 1, 32, 128>}]} {
    %c0_i32 = arith.constant 0 : i32
    %0 = arith.cmpi eq, %arg2, %c0_i32 : i32
    %1 = arith.extui %0 : i1 to i32
    %c0_i32_0 = arith.constant 0 : i32
    %2 = arith.cmpi ne, %1, %c0_i32_0 : i32
    scf.if %2 {
      %cst_32 = arith.constant 0xFF800000 : f32
      %46 = vector.broadcast %cst_32 : f32 to vector<32x128xf32>
      %c0_33 = arith.constant 0 : index
      %c0_34 = arith.constant 0 : index
      %47 = vector.load %arg13[%c0_33, %c0_34] : memref<32x128xf32, #tpu.memory_space<vmem>>, vector<32x128xf32>
      tpu.vector_store %arg13[%c0_33, %c0_34], %46 {strides = array<i32>} : memref<32x128xf32, #tpu.memory_space<vmem>>, vector<32x128xf32>,
    } else {
    }
    %c0 = arith.constant 0 : index
    %c0_1 = arith.constant 0 : index
    %c0_2 = arith.constant 0 : index
    %3 = vector.load %arg3[%c0, %c0_1, %c0_2] : memref<1x8x256xf32, #tpu.memory_space<vmem>>, vector<1x8x256xf32>
    %4 = vector.shape_cast %3 : vector<1x8x256xf32> to vector<8x256xf32>
    %5 = arith.truncf %4 : vector<8x256xf32> to vector<8x256xbf16>
    %c0_3 = arith.constant 0 : index
    %c0_4 = arith.constant 0 : index
    %6 = vector.load %arg4[%c0_3, %c0_4] : memref<64x8xbf16, #tpu.memory_space<vmem>>, vector<64x8xbf16>
    %cst = arith.constant dense<0.000000e+00> : vector<64x256xf32>
    %7 = tpu.matmul %6, %5, %cst {dimension_numbers = #tpu.dot_dimension_numbers<[1], [0], [0], [1], [0, 0, 1, 1], [], []>} : vector<64x8xbf16>, vector<8x256xbf16>, vector<64x256xf32> -> vector<64x256xf32>
    %c0_5 = arith.constant 0 : index
    %c0_6 = arith.constant 0 : index
    %8 = vector.load %arg5[%c0_5, %c0_6] : memref<64x1xf32, #tpu.memory_space<vmem>>, vector<64x1xf32>
    %9 = vector.broadcast %8 : vector<64x1xf32> to vector<64x256xf32>
    %10 = arith.addf %7, %9 : vector<64x256xf32>
    %cst_7 = arith.constant 0.000000e+00 : f32
    %11 = vector.broadcast %cst_7 : f32 to vector<64x256xf32>
    %12 = arith.maximumf %10, %11 : vector<64x256xf32>
    %13 = arith.truncf %12 : vector<64x256xf32> to vector<64x256xbf16>
    %c0_8 = arith.constant 0 : index
    %c0_9 = arith.constant 0 : index
    %14 = vector.load %arg6[%c0_8, %c0_9] : memref<128x64xbf16, #tpu.memory_space<vmem>>, vector<128x64xbf16>
    %cst_10 = arith.constant dense<0.000000e+00> : vector<128x256xf32>
    %15 = tpu.matmul %14, %13, %cst_10 {dimension_numbers = #tpu.dot_dimension_numbers<[1], [0], [0], [1], [0, 0, 1, 1], [], []>} : vector<128x64xbf16>, vector<64x256xbf16>, vector<128x256xf32> -> vector<128x256xf32>
    %c0_11 = arith.constant 0 : index
    %c0_12 = arith.constant 0 : index
    %16 = vector.load %arg7[%c0_11, %c0_12] : memref<128x1xf32, #tpu.memory_space<vmem>>, vector<128x1xf32>
    %17 = vector.broadcast %16 : vector<128x1xf32> to vector<128x256xf32>
    %18 = arith.addf %15, %17 : vector<128x256xf32>
    %cst_13 = arith.constant 0.000000e+00 : f32
    %19 = vector.broadcast %cst_13 : f32 to vector<128x256xf32>
    %20 = arith.maximumf %18, %19 : vector<128x256xf32>
    %21 = arith.truncf %20 : vector<128x256xf32> to vector<128x256xbf16>
    %c0_14 = arith.constant 0 : index
    %c0_15 = arith.constant 0 : index
    %22 = vector.load %arg8[%c0_14, %c0_15] : memref<128x128xbf16, #tpu.memory_space<vmem>>, vector<128x128xbf16>
    %cst_16 = arith.constant dense<0.000000e+00> : vector<128x256xf32>
    %23 = tpu.matmul %22, %21, %cst_16 {dimension_numbers = #tpu.dot_dimension_numbers<[1], [0], [0], [1], [0, 0, 1, 1], [], []>} : vector<128x128xbf16>, vector<128x256xbf16>, vector<128x256xf32> -> vector<128x256xf32>
    %c0_17 = arith.constant 0 : index
    %c0_18 = arith.constant 0 : index
    %24 = vector.load %arg9[%c0_17, %c0_18] : memref<128x1xf32, #tpu.memory_space<vmem>>, vector<128x1xf32>
    %25 = vector.broadcast %24 : vector<128x1xf32> to vector<128x256xf32>
    %26 = arith.addf %23, %25 : vector<128x256xf32>
    %cst_19 = arith.constant 0.000000e+00 : f32
    %27 = vector.broadcast %cst_19 : f32 to vector<128x256xf32>
    %28 = arith.maximumf %26, %27 : vector<128x256xf32>
    %29 = arith.truncf %28 : vector<128x256xf32> to vector<128x256xbf16>
    %c0_20 = arith.constant 0 : index
    %c0_21 = arith.constant 0 : index
    %30 = vector.load %arg10[%c0_20, %c0_21] : memref<32x128xbf16, #tpu.memory_space<vmem>>, vector<32x128xbf16>
    %cst_22 = arith.constant dense<0.000000e+00> : vector<32x256xf32>
    %31 = tpu.matmul %30, %29, %cst_22 {dimension_numbers = #tpu.dot_dimension_numbers<[1], [0], [0], [1], [0, 0, 1, 1], [], []>} : vector<32x128xbf16>, vector<128x256xbf16>, vector<32x256xf32> -> vector<32x256xf32>
    %c0_23 = arith.constant 0 : index
    %c0_24 = arith.constant 0 : index
    %32 = vector.load %arg11[%c0_23, %c0_24] : memref<32x1xf32, #tpu.memory_space<vmem>>, vector<32x1xf32>
    %33 = vector.broadcast %32 : vector<32x1xf32> to vector<32x256xf32>
    %34 = arith.addf %31, %33 : vector<32x256xf32>
    %cst_25 = arith.constant 0.000000e+00 : f32
    %35 = vector.broadcast %cst_25 : f32 to vector<32x256xf32>
    %36 = arith.maximumf %34, %35 : vector<32x256xf32>
    %37 = vector.extract_strided_slice %36 {offsets = [0, 0], sizes = [32, 128], strides = [1, 1]} : vector<32x256xf32> to vector<32x128xf32>
    %38 = vector.extract_strided_slice %36 {offsets = [0, 128], sizes = [32, 128], strides = [1, 1]} : vector<32x256xf32> to vector<32x128xf32>
    %39 = arith.maximumf %37, %38 : vector<32x128xf32>
    %c0_26 = arith.constant 0 : index
    %c0_27 = arith.constant 0 : index
    %40 = vector.load %arg13[%c0_26, %c0_27] : memref<32x128xf32, #tpu.memory_space<vmem>>, vector<32x128xf32>
    %41 = arith.maximumf %40, %39 : vector<32x128xf32>
    %c0_28 = arith.constant 0 : index
    %c0_29 = arith.constant 0 : index
    %42 = vector.load %arg13[%c0_28, %c0_29] : memref<32x128xf32, #tpu.memory_space<vmem>>, vector<32x128xf32>
    tpu.vector_store %arg13[%c0_28, %c0_29], %41 {strides = array<i32>} : memref<32x128xf32, #tpu.memory_space<vmem>>, vector<32x128xf32>,
    %c0_i32_30 = arith.constant 0 : i32
    %43 = arith.cmpi eq, %arg2, %c0_i32_30 : i32
    %44 = arith.extui %43 : i1 to i32
    %c0_i32_31 = arith.constant 0 : i32
    %45 = arith.cmpi ne, %44, %c0_i32_31 : i32
    scf.if %45 {
      %c0_32 = arith.constant 0 : index
      %c0_33 = arith.constant 0 : index
      %46 = vector.load %arg13[%c0_32, %c0_33] : memref<32x128xf32, #tpu.memory_space<vmem>>, vector<32x128xf32>
      %c0_34 = arith.constant 0 : index
      %c0_35 = arith.constant 0 : index
      %c0_36 = arith.constant 0 : index
      %c0_37 = arith.constant 0 : index
      %47 = vector.load %arg12[%c0_34, %c0_35, %c0_36, %c0_37] : memref<1x1x32x128xf32, #tpu.memory_space<vmem>>, vector<1x1x32x128xf32>
      %48 = vector.shape_cast %47 : vector<1x1x32x128xf32> to vector<32x128xf32>
      %49 = vector.shape_cast %46 : vector<32x128xf32> to vector<1x1x32x128xf32>
      tpu.vector_store %arg12[%c0_34, %c0_35, %c0_36, %c0_37], %49 {strides = array<i32>} : memref<1x1x32x128xf32, #tpu.memory_space<vmem>>, vector<1x1x32x128xf32>,
    } else {
    }
    return
  }
  func.func @transform_0(%arg0: i32, %arg1: i32, %arg2: i32) -> (i32, i32, i32) {
    %c1_i32 = arith.constant 1 : i32
    %0 = arith.muli %arg1, %c1_i32 : i32
    %1 = arith.addi %0, %arg2 : i32
    %c0_i32 = arith.constant 0 : i32
    %c0_i32_0 = arith.constant 0 : i32
    return %arg0, %c0_i32, %1 : i32, i32, i32
  }
  func.func @transform_1(%arg0: i32, %arg1: i32, %arg2: i32) -> (i32, i32) {
    %c0_i32 = arith.constant 0 : i32
    %c0_i32_0 = arith.constant 0 : i32
    %c0_i32_1 = arith.constant 0 : i32
    return %c0_i32, %c0_i32_0 : i32, i32
  }
  func.func @transform_2(%arg0: i32, %arg1: i32, %arg2: i32) -> (i32, i32) {
    %c0_i32 = arith.constant 0 : i32
    %c0_i32_0 = arith.constant 0 : i32
    %c0_i32_1 = arith.constant 0 : i32
    return %c0_i32, %c0_i32_0 : i32, i32
  }
  func.func @transform_3(%arg0: i32, %arg1: i32, %arg2: i32) -> (i32, i32) {
    %c0_i32 = arith.constant 0 : i32
    %c0_i32_0 = arith.constant 0 : i32
    %c0_i32_1 = arith.constant 0 : i32
    return %c0_i32, %c0_i32_0 : i32, i32
  }
  func.func @transform_4(%arg0: i32, %arg1: i32, %arg2: i32) -> (i32, i32) {
    %c0_i32 = arith.constant 0 : i32
    %c0_i32_0 = arith.constant 0 : i32
    %c0_i32_1 = arith.constant 0 : i32
    return %c0_i32, %c0_i32_0 : i32, i32
  }
  func.func @transform_5(%arg0: i32, %arg1: i32, %arg2: i32) -> (i32, i32) {
    %c0_i32 = arith.constant 0 : i32
    %c0_i32_0 = arith.constant 0 : i32
    %c0_i32_1 = arith.constant 0 : i32
    return %c0_i32, %c0_i32_0 : i32, i32
  }
  func.func @transform_6(%arg0: i32, %arg1: i32, %arg2: i32) -> (i32, i32) {
    %c0_i32 = arith.constant 0 : i32
    %c0_i32_0 = arith.constant 0 : i32
    %c0_i32_1 = arith.constant 0 : i32
    return %c0_i32, %c0_i32_0 : i32, i32
  }
  func.func @transform_7(%arg0: i32, %arg1: i32, %arg2: i32) -> (i32, i32) {
    %c0_i32 = arith.constant 0 : i32
    %c0_i32_0 = arith.constant 0 : i32
    %c0_i32_1 = arith.constant 0 : i32
    return %c0_i32, %c0_i32_0 : i32, i32
  }
  func.func @transform_8(%arg0: i32, %arg1: i32, %arg2: i32) -> (i32, i32) {
    %c0_i32 = arith.constant 0 : i32
    %c0_i32_0 = arith.constant 0 : i32
    %c0_i32_1 = arith.constant 0 : i32
    return %c0_i32, %c0_i32_0 : i32, i32
  }
  func.func @transform_9(%arg0: i32, %arg1: i32, %arg2: i32) -> (i32, i32, i32, i32) {
    %c0_i32 = arith.constant 0 : i32
    %c0_i32_0 = arith.constant 0 : i32
    %c0_i32_1 = arith.constant 0 : i32
    return %arg0, %arg1, %c0_i32, %c0_i32_0 : i32, i32, i32, i32
  }
}

</mosaic_0001>

<llo_original>
// kernel: simple_pc_encoder.1
$region0: #{simple_pc_encoder.1}
  #allocation0 [shape = 'u32[]', space=smem, size = 0x4, offset = 0x4, fixed_abs, tag = 'smem constant byte address 0x4 - core index']
  #allocation1 [shape = 'u32[144,128]{1,0:T(1,128)}', space=vmem, size = 0x12000, scoped, tag = 'internal scratch']
  #allocation2 [shape = 'f32[32,128]{1,0:T(8,128)}', space=vmem, size = 0x4000, scoped, tag = 'scratch operand']
  %s0 = inlined_call_operand.vmem [shape: f32[2,8,256], index: 0, kind: input, shape index: {}]
  %s1 = inlined_call_operand.vmem [shape: bf16[64,8], index: 1, kind: input, shape index: {}]
  %s2 = inlined_call_operand.vmem [shape: f32[64,1], index: 2, kind: input, shape index: {}]
  %s3 = inlined_call_operand.vmem [shape: bf16[128,64], index: 3, kind: input, shape index: {}]
  %s4 = inlined_call_operand.vmem [shape: f32[128,1], index: 4, kind: input, shape index: {}]
  %s5 = inlined_call_operand.vmem [shape: bf16[128,128], index: 5, kind: input, shape index: {}]
  %s6 = inlined_call_operand.vmem [shape: f32[128,1], index: 6, kind: input, shape index: {}]
  %s7 = inlined_call_operand.vmem [shape: bf16[32,128], index: 7, kind: input, shape index: {}]
  %s8 = inlined_call_operand.vmem [shape: f32[32,1], index: 8, kind: input, shape index: {}]
  %s9 = inlined_call_operand.vmem [shape: f32[2,1,32,128], index: 9, kind: output, shape index: {}]
  %s10 = sld [smem:[#allocation0]]
  $region77: #{simple_pc_encoder.1} parent=0
    _
  %s12 = ssub.s32 1, %s10
  %s13 = scalar_select 0, %s12, %s10
  loop: start=0, step=1, limit=4
  $region2: #{simple_pc_encoder.1} parent=0 // loop_pre_header
    _
  $region3: #{simple_pc_encoder.1} parent=0 // loop_header
    %s15 = sphi 0, %s19
    %p16 = scmp.ge.s32.totalorder %s15, 4
    %s22 = sphi 0, %s41
    %s23 = sphi 0, %s37
    %s24 = sphi 0, %s33
    %s25 = sphi 0, %s22
    %s26 = sphi 0, %s23
    %s27 = sphi 0, %s24
    %s28 = sphi 0, %s25
    %s29 = sphi 0, %s26
    %s30 = sphi 0, %s27
    %s48 = sphi 0, %s50
    %s51 = sphi 0, %s48
    %s52 = sphi 0, %s51
    %s68 = sphi 0, %s52
    %s72 = sphi 0, %s72
    %s74 = sphi 0, %s72
    %s75 = sphi 0, %s74
    %s89 = sphi 0, %s75
    %s93 = sphi 0, %s93
    %s95 = sphi 0, %s93
    %s96 = sphi 0, %s95
    %s110 = sphi 0, %s96
    %s114 = sphi 0, %s114
    %s116 = sphi 0, %s114
    %s117 = sphi 0, %s116
    %s131 = sphi 0, %s117
    %s135 = sphi 0, %s135
    %s137 = sphi 0, %s135
    %s138 = sphi 0, %s137
    %s152 = sphi 0, %s138
    %s156 = sphi 0, %s156
    %s158 = sphi 0, %s156
    %s159 = sphi 0, %s158
    %s173 = sphi 0, %s159
    %s177 = sphi 0, %s177
    %s179 = sphi 0, %s177
    %s180 = sphi 0, %s179
    %s194 = sphi 0, %s180
    %s198 = sphi 0, %s198
    %s200 = sphi 0, %s198
    %s201 = sphi 0, %s200
    %s215 = sphi 0, %s201
    %s219 = sphi 0, %s219
    %s221 = sphi 0, %s219
    %s222 = sphi 0, %s221
    %s236 = sphi 0, %s222
    %s244 = sphi 0, %s246
    %s247 = sphi 0, %s244
    %s248 = sphi 0, %s247
    %s264 = sphi 0, %s248
  $region4: #{simple_pc_encoder.1} parent=0 // loop_header_branch
    %18 = sbr.rel (%p16) target = $region8
  $region5: #{simple_pc_encoder.1} parent=0 // loop_body
    %s20 = ssub.s32 %s15, 1
    %s21 = ssub.s32 %s15, 2
    %s31 = sadd.s32 1, %s24
    %p32 = scmp.ge.s32.totalorder %s31, 1
    %s33 = scalar_select %p32, 0, %s31
    %s34 = sadd.s32 1, %s23
    %s35 = scalar_select %p32, %s34, %s23
    %p36 = scmp.ge.s32.totalorder %s35, 1
    %s37 = scalar_select %p36, 0, %s35
    %s38 = sadd.s32 1, %s22
    %s39 = scalar_select %p36, %s38, %s22
    %p40 = scmp.ge.s32.totalorder %s39, 2
    %s41 = scalar_select %p40, 0, %s39
    %s42 = sadd.s32 %s23, %s24
    %s43 = sadd.s32 %s37, %s33
    %s44 = ssub.s32 %s22, %s41
    %s45 = ssub.s32 %s42, %s43
    %s46 = sor.u32 %s44, %s45
    %p47 = scmp.eq.s32.totalorder %s46, 0
    %s49 = sadd.s32 %s48, 1
    %s50 = scalar_select %p47, %s48, %s49
    %p53 = pneg %p47
    %p54 = scmp.eq.s32.totalorder %s15, 1
    %p55 = por %p53, %p54
    %p56 = scmp.ne.s32.totalorder %s48, %s51
    %p57 = scmp.eq.s32.totalorder %s15, 0
    %p58 = por %p56, %p57
    %p59 = scmp.ne.s32.totalorder %s48, %s51
    %p60 = scmp.eq.s32.totalorder %s20, 1
    %p61 = por %p59, %p60
    %p62 = scmp.ne.s32.totalorder %s51, %s52
    %p63 = scmp.eq.s32.totalorder %s20, 0
    %p64 = por %p62, %p63
    %p65 = scmp.ne.s32.totalorder %s51, %s52
    %p66 = scmp.eq.s32.totalorder %s21, 1
    %p67 = por %p65, %p66
    %p69 = scmp.ne.s32.totalorder %s52, %s68
    %p70 = scmp.eq.s32.totalorder %s21, 0
    %p71 = por %p69, %p70
    %s73 = sadd.s32 %s72, 1
    %p76 = scmp.eq.s32.totalorder %s15, 1
    %p77 = scmp.ne.s32.totalorder %s72, %s74
    %p78 = scmp.eq.s32.totalorder %s15, 0
    %p79 = por %p77, %p78
    %p80 = scmp.ne.s32.totalorder %s72, %s74
    %p81 = scmp.eq.s32.totalorder %s20, 1
    %p82 = por %p80, %p81
    %p83 = scmp.ne.s32.totalorder %s74, %s75
    %p84 = scmp.eq.s32.totalorder %s20, 0
    %p85 = por %p83, %p84
    %p86 = scmp.ne.s32.totalorder %s74, %s75
    %p87 = scmp.eq.s32.totalorder %s21, 1
    %p88 = por %p86, %p87
    %p90 = scmp.ne.s32.totalorder %s75, %s89
    %p91 = scmp.eq.s32.totalorder %s21, 0
    %p92 = por %p90, %p91
    %s94 = sadd.s32 %s93, 1
    %p97 = scmp.eq.s32.totalorder %s15, 1
    %p98 = scmp.ne.s32.totalorder %s93, %s95
    %p99 = scmp.eq.s32.totalorder %s15, 0
    %p100 = por %p98, %p99
    %p101 = scmp.ne.s32.totalorder %s93, %s95
    %p102 = scmp.eq.s32.totalorder %s20, 1
    %p103 = por %p101, %p102
    %p104 = scmp.ne.s32.totalorder %s95, %s96
    %p105 = scmp.eq.s32.totalorder %s20, 0
    %p106 = por %p104, %p105
    %p107 = scmp.ne.s32.totalorder %s95, %s96
    %p108 = scmp.eq.s32.totalorder %s21, 1
    %p109 = por %p107, %p108
    %p111 = scmp.ne.s32.totalorder %s96, %s110
    %p112 = scmp.eq.s32.totalorder %s21, 0
    %p113 = por %p111, %p112
    %s115 = sadd.s32 %s114, 1
    %p118 = scmp.eq.s32.totalorder %s15, 1
    %p119 = scmp.ne.s32.totalorder %s114, %s116
    %p120 = scmp.eq.s32.totalorder %s15, 0
    %p121 = por %p119, %p120
    %p122 = scmp.ne.s32.totalorder %s114, %s116
    %p123 = scmp.eq.s32.totalorder %s20, 1
    %p124 = por %p122, %p123
    %p125 = scmp.ne.s32.totalorder %s116, %s117
    %p126 = scmp.eq.s32.totalorder %s20, 0
    %p127 = por %p125, %p126
    %p128 = scmp.ne.s32.totalorder %s116, %s117
    %p129 = scmp.eq.s32.totalorder %s21, 1
    %p130 = por %p128, %p129
    %p132 = scmp.ne.s32.totalorder %s117, %s131
    %p133 = scmp.eq.s32.totalorder %s21, 0
    %p134 = por %p132, %p133
    %s136 = sadd.s32 %s135, 1
    %p139 = scmp.eq.s32.totalorder %s15, 1
    %p140 = scmp.ne.s32.totalorder %s135, %s137
    %p141 = scmp.eq.s32.totalorder %s15, 0
    %p142 = por %p140, %p141
    %p143 = scmp.ne.s32.totalorder %s135, %s137
    %p144 = scmp.eq.s32.totalorder %s20, 1
    %p145 = por %p143, %p144
    %p146 = scmp.ne.s32.totalorder %s137, %s138
    %p147 = scmp.eq.s32.totalorder %s20, 0
    %p148 = por %p146, %p147
    %p149 = scmp.ne.s32.totalorder %s137, %s138
    %p150 = scmp.eq.s32.totalorder %s21, 1
    %p151 = por %p149, %p150
    %p153 = scmp.ne.s32.totalorder %s138, %s152
    %p154 = scmp.eq.s32.totalorder %s21, 0
    %p155 = por %p153, %p154
    %s157 = sadd.s32 %s156, 1
    %p160 = scmp.eq.s32.totalorder %s15, 1
    %p161 = scmp.ne.s32.totalorder %s156, %s158
    %p162 = scmp.eq.s32.totalorder %s15, 0
    %p163 = por %p161, %p162
    %p164 = scmp.ne.s32.totalorder %s156, %s158
    %p165 = scmp.eq.s32.totalorder %s20, 1
    %p166 = por %p164, %p165
    %p167 = scmp.ne.s32.totalorder %s158, %s159
    %p168 = scmp.eq.s32.totalorder %s20, 0
    %p169 = por %p167, %p168
    %p170 = scmp.ne.s32.totalorder %s158, %s159
    %p171 = scmp.eq.s32.totalorder %s21, 1
    %p172 = por %p170, %p171
    %p174 = scmp.ne.s32.totalorder %s159, %s173
    %p175 = scmp.eq.s32.totalorder %s21, 0
    %p176 = por %p174, %p175
    %s178 = sadd.s32 %s177, 1
    %p181 = scmp.eq.s32.totalorder %s15, 1
    %p182 = scmp.ne.s32.totalorder %s177, %s179
    %p183 = scmp.eq.s32.totalorder %s15, 0
    %p184 = por %p182, %p183
    %p185 = scmp.ne.s32.totalorder %s177, %s179
    %p186 = scmp.eq.s32.totalorder %s20, 1
    %p187 = por %p185, %p186
    %p188 = scmp.ne.s32.totalorder %s179, %s180
    %p189 = scmp.eq.s32.totalorder %s20, 0
    %p190 = por %p188, %p189
    %p191 = scmp.ne.s32.totalorder %s179, %s180
    %p192 = scmp.eq.s32.totalorder %s21, 1
    %p193 = por %p191, %p192
    %p195 = scmp.ne.s32.totalorder %s180, %s194
    %p196 = scmp.eq.s32.totalorder %s21, 0
    %p197 = por %p195, %p196
    %s199 = sadd.s32 %s198, 1
    %p202 = scmp.eq.s32.totalorder %s15, 1
    %p203 = scmp.ne.s32.totalorder %s198, %s200
    %p204 = scmp.eq.s32.totalorder %s15, 0
    %p205 = por %p203, %p204
    %p206 = scmp.ne.s32.totalorder %s198, %s200
    %p207 = scmp.eq.s32.totalorder %s20, 1
    %p208 = por %p206, %p207
    %p209 = scmp.ne.s32.totalorder %s200, %s201
    %p210 = scmp.eq.s32.totalorder %s20, 0
    %p211 = por %p209, %p210
    %p212 = scmp.ne.s32.totalorder %s200, %s201
    %p213 = scmp.eq.s32.totalorder %s21, 1
    %p214 = por %p212, %p213
    %p216 = scmp.ne.s32.totalorder %s201, %s215
    %p217 = scmp.eq.s32.totalorder %s21, 0
    %p218 = por %p216, %p217
    %s220 = sadd.s32 %s219, 1
    %p223 = scmp.eq.s32.totalorder %s15, 1
    %p224 = scmp.ne.s32.totalorder %s219, %s221
    %p225 = scmp.eq.s32.totalorder %s15, 0
    %p226 = por %p224, %p225
    %p227 = scmp.ne.s32.totalorder %s219, %s221
    %p228 = scmp.eq.s32.totalorder %s20, 1
    %p229 = por %p227, %p228
    %p230 = scmp.ne.s32.totalorder %s221, %s222
    %p231 = scmp.eq.s32.totalorder %s20, 0
    %p232 = por %p230, %p231
    %p233 = scmp.ne.s32.totalorder %s221, %s222
    %p234 = scmp.eq.s32.totalorder %s21, 1
    %p235 = por %p233, %p234
    %p237 = scmp.ne.s32.totalorder %s222, %s236
    %p238 = scmp.eq.s32.totalorder %s21, 0
    %p239 = por %p237, %p238
    %s240 = ssub.s32 %s22, %s41
    %s241 = ssub.s32 %s23, %s37
    %s242 = sor.u32 %s240, %s241
    %p243 = scmp.eq.s32.totalorder %s242, 0
    %s245 = sadd.s32 %s244, 1
    %s246 = scalar_select %p243, %s244, %s245
    %p249 = pneg %p243
    %p250 = scmp.eq.s32.totalorder %s15, 1
    %p251 = por %p249, %p250
    %p252 = scmp.ne.s32.totalorder %s244, %s247
    %p253 = scmp.eq.s32.totalorder %s15, 0
    %p254 = por %p252, %p253
    %p255 = scmp.ne.s32.totalorder %s244, %s247
    %p256 = scmp.eq.s32.totalorder %s20, 1
    %p257 = por %p255, %p256
    %p258 = scmp.ne.s32.totalorder %s247, %s248
    %p259 = scmp.eq.s32.totalorder %s20, 0
    %p260 = por %p258, %p259
    %p261 = scmp.ne.s32.totalorder %s247, %s248
    %p262 = scmp.eq.s32.totalorder %s21, 1
    %p263 = por %p261, %p262
    %p265 = scmp.ne.s32.totalorder %s248, %s264
    %p266 = scmp.eq.s32.totalorder %s21, 0
    %p267 = por %p265, %p266
    %p268 = scmp.le.s32.totalorder 1, %s15
    %p269 = scmp.lt.s32.totalorder %s15, 3
    %p270 = pnand %p268, %p269
    %p271 = pneg %p270
    // Predicated region
    $region9: #{simple_pc_encoder.1} parent=5 // pred_check
      _
    $region10: #{simple_pc_encoder.1} parent=5 // pred_check_branch
      %273 = sbr.rel (%p270) target = $region12
    $region11: #{simple_pc_encoder.1} parent=5 // pred_region
      %s274 = ssub.s32 %s15, 1
      // Predicated region
      $region13: #{simple_pc_encoder.1} parent=11 // pred_check
        %p275 = pneg %p85
      $region14: #{simple_pc_encoder.1} parent=11 // pred_check_branch
        %277 = sbr.rel (%p275) target = $region16
      $region15: #{simple_pc_encoder.1} parent=11 // pred_region
        _
      $region16: #{simple_pc_encoder.1} parent=11 // pred_fallthru
        _
      // Predicated region
      $region17: #{simple_pc_encoder.1} parent=11 // pred_check
        %p278 = pneg %p106
      $region18: #{simple_pc_encoder.1} parent=11 // pred_check_branch
        %280 = sbr.rel (%p278) target = $region20
      $region19: #{simple_pc_encoder.1} parent=11 // pred_region
        _
      $region20: #{simple_pc_encoder.1} parent=11 // pred_fallthru
        _
      // Predicated region
      $region21: #{simple_pc_encoder.1} parent=11 // pred_check
        %p281 = pneg %p127
      $region22: #{simple_pc_encoder.1} parent=11 // pred_check_branch
        %283 = sbr.rel (%p281) target = $region24
      $region23: #{simple_pc_encoder.1} parent=11 // pred_region
        _
      $region24: #{simple_pc_encoder.1} parent=11 // pred_fallthru
        _
      // Predicated region
      $region25: #{simple_pc_encoder.1} parent=11 // pred_check
        %p284 = pneg %p148
      $region26: #{simple_pc_encoder.1} parent=11 // pred_check_branch
        %286 = sbr.rel (%p284) target = $region28
      $region27: #{simple_pc_encoder.1} parent=11 // pred_region
        _
      $region28: #{simple_pc_encoder.1} parent=11 // pred_fallthru
        _
      // Predicated region
      $region29: #{simple_pc_encoder.1} parent=11 // pred_check
        %p287 = pneg %p169
      $region30: #{simple_pc_encoder.1} parent=11 // pred_check_branch
        %289 = sbr.rel (%p287) target = $region32
      $region31: #{simple_pc_encoder.1} parent=11 // pred_region
        _
      $region32: #{simple_pc_encoder.1} parent=11 // pred_fallthru
        _
      // Predicated region
      $region33: #{simple_pc_encoder.1} parent=11 // pred_check
        %p290 = pneg %p190
      $region34: #{simple_pc_encoder.1} parent=11 // pred_check_branch
        %292 = sbr.rel (%p290) target = $region36
      $region35: #{simple_pc_encoder.1} parent=11 // pred_region
        _
      $region36: #{simple_pc_encoder.1} parent=11 // pred_fallthru
        _
      // Predicated region
      $region37: #{simple_pc_encoder.1} parent=11 // pred_check
        %p293 = pneg %p211
      $region38: #{simple_pc_encoder.1} parent=11 // pred_check_branch
        %295 = sbr.rel (%p293) target = $region40
      $region39: #{simple_pc_encoder.1} parent=11 // pred_region
        _
      $region40: #{simple_pc_encoder.1} parent=11 // pred_fallthru
        _
      // Predicated region
      $region41: #{simple_pc_encoder.1} parent=11 // pred_check
        %p296 = pneg %p232
      $region42: #{simple_pc_encoder.1} parent=11 // pred_check_branch
        %298 = sbr.rel (%p296) target = $region44
      $region43: #{simple_pc_encoder.1} parent=11 // pred_region
        _
      $region44: #{simple_pc_encoder.1} parent=11 // pred_fallthru
        _
    $region12: #{simple_pc_encoder.1} parent=5 // pred_fallthru
      _
    %p299 = scmp.lt.s32.totalorder %s15, 2
    // Predicated region
    $region45: #{simple_pc_encoder.1} parent=5 // pred_check
      %p300 = pneg %p299
    $region46: #{simple_pc_encoder.1} parent=5 // pred_check_branch
      %302 = sbr.rel (%p300) target = $region48
    $region47: #{simple_pc_encoder.1} parent=5 // pred_region
      // Predicated region
      $region49: #{simple_pc_encoder.1} parent=47 // pred_check
        %p303 = pneg %p58
      $region50: #{simple_pc_encoder.1} parent=47 // pred_check_branch
        %305 = sbr.rel (%p303) target = $region52
      $region51: #{simple_pc_encoder.1} parent=47 // pred_region
        %s306 = sadd.s32 %s23, %s24
        %s307 = smul.u32 2, %s306
        %p308 = scmp.lt.s32.totalorder %s22, 1
        %s309 = scalar_select %p308, %s22, 1
        %p310 = scmp.lt.s32.totalorder %s307, 1
        %s311 = scalar_select %p310, %s307, 1
        %s312 = smul.addr %s309, 2
        %s313 = sadd.s32 %s311, %s312
        %s314 = smul.addr %s313, 8
        %s315 = scalar_lea.vmem %s0, %s314
        %s316 = sadd.s32 %s23, %s24
        %s317 = smul.u32 2, %s316
      $region52: #{simple_pc_encoder.1} parent=47 // pred_fallthru
        _
    $region48: #{simple_pc_encoder.1} parent=5 // pred_fallthru
      _
    %p318 = scmp.le.s32.totalorder 1, %s15
    %p319 = scmp.lt.s32.totalorder %s15, 3
    %p320 = pnand %p318, %p319
    %p321 = pneg %p320
    // Predicated region
    $region53: #{simple_pc_encoder.1} parent=5 // pred_check
      _
    $region54: #{simple_pc_encoder.1} parent=5 // pred_check_branch
      %323 = sbr.rel (%p320) target = $region56
    $region55: #{simple_pc_encoder.1} parent=5 // pred_region
      %s324 = ssub.s32 %s15, 1
      %s325 = sadd.s32 %s26, %s27
      %s326 = smul.u32 2, %s325
      %p327 = scmp.lt.s32.totalorder %s25, 1
      %s328 = scalar_select %p327, %s25, 1
      %p329 = scmp.lt.s32.totalorder %s326, 1
      %s330 = scalar_select %p329, %s326, 1
      %s331 = smul.addr %s328, 2
      %s332 = sadd.s32 %s330, %s331
      %s333 = smul.addr %s332, 8
      %s334 = scalar_lea.vmem %s0, %s333
      %p335 = pneg %p64
      %p336 = pneg %p61
      %p337 = pneg %p85
      %p338 = pneg %p82
      %p339 = pneg %p106
      %p340 = pneg %p103
      %p341 = pneg %p127
      %p342 = pneg %p124
      %p343 = pneg %p148
      %p344 = pneg %p145
      %p345 = pneg %p169
      %p346 = pneg %p166
      %p347 = pneg %p190
      %p348 = pneg %p187
      %p349 = pneg %p211
      %p350 = pneg %p208
      %p351 = pneg %p232
      %p352 = pneg %p229
      %p353 = pneg %p260
      %p354 = pneg %p257
      %p355 = scmp.lt.s32.totalorder %s25, 1
      %s356 = scalar_select %p355, %s25, 1
      %p357 = scmp.lt.s32.totalorder %s26, 0
      %s358 = scalar_select %p357, %s26, 0
      %s359 = smul.addr %s358, 4
      %s360 = smul.addr %s356, 4
      %s361 = sadd.s32 %s359, %s360
      %s362 = smul.addr %s361, 8
      %s363 = scalar_lea.vmem %s9, %s362
      %s364 = sadd.s32 %s26, %s27
      %s365 = smul.u32 2, %s364
      %p366 = scmp.lt.s32.totalorder %s25, 1
      %s367 = scalar_select %p366, %s25, 1
      %p368 = scmp.lt.s32.totalorder %s365, 1
      %s369 = scalar_select %p368, %s365, 1
      %s370 = smul.addr %s367, 2
      %s371 = sadd.s32 %s369, %s370
      %s372 = smul.addr %s371, 8
      %s373 = scalar_lea.vmem %s0, %s372
      %s374 = sadd.s32 %s26, %s27
      %s375 = smul.u32 2, %s374
      %p376 = scmp.lt.s32.totalorder %s25, 1
      %s377 = scalar_select %p376, %s25, 1
      %p378 = scmp.lt.s32.totalorder %s26, 0
      %s379 = scalar_select %p378, %s26, 0
      %s380 = smul.addr %s379, 4
      %s381 = smul.addr %s377, 4
      %s382 = sadd.s32 %s380, %s381
      %s383 = smul.addr %s382, 8
      %s384 = scalar_lea.vmem %s9, %s383
      %p386 = scmp.eq.s32.totalorder %s27, 0
      // Predicated region
      $region57: #{simple_pc_encoder.1} parent=55 // pred_check
        %p387 = pneg %p386
      $region58: #{simple_pc_encoder.1} parent=55 // pred_check_branch
        %389 = sbr.rel (%p387) target = $region60
      $region59: #{simple_pc_encoder.1} parent=55 // pred_region
        %390 = vst [vmem:[#allocation2] sm:$0xff] -inf
        %391 = vst [vmem:[#allocation2 + $0x8] sm:$0xff] -inf
        %392 = vst [vmem:[#allocation2 + $0x10] sm:$0xff] -inf
        %393 = vst [vmem:[#allocation2 + $0x18] sm:$0xff] -inf
      $region60: #{simple_pc_encoder.1} parent=55 // pred_fallthru
        _
      %v394 = vld [vmem:[%s373] sm:$0xff]
      %v395 = vld [vmem:[%s373 + $0x8] sm:$0xff]
      %v396 = vpack.c.bf16 %v394, %v394
      %v397 = vpack.c.bf16 %v395, %v395
      %v398 = vld [vmem:[%s1] sm:$0xf]
      %v399 = vld [vmem:[%s1 + $0x4] sm:$0xf]
      %v400 = vld [vmem:[%s1 + $0x8] sm:$0xf]
      %v401 = vld [vmem:[%s1 + $0xc] sm:$0xf]
      %v402 = vld [vmem:[%s1 + $0x10] sm:$0xf]
      %v403 = vld [vmem:[%s1 + $0x14] sm:$0xf]
      %v404 = vld [vmem:[%s1 + $0x18] sm:$0xf]
      %v405 = vld [vmem:[%s1 + $0x1c] sm:$0xf]
      %v406 = vld [vmem:[%s2] sm:$0xff]
      %v407 = vld [vmem:[%s2 + $0x8] sm:$0xff]
      %v408 = vld [vmem:[%s2 + $0x10] sm:$0xff]
      %v409 = vld [vmem:[%s2 + $0x18] sm:$0xff]
      %v410 = vld [vmem:[%s2 + $0x20] sm:$0xff]
      %v411 = vld [vmem:[%s2 + $0x28] sm:$0xff]
      %v412 = vld [vmem:[%s2 + $0x30] sm:$0xff]
      %v413 = vld [vmem:[%s2 + $0x38] sm:$0xff]
      %415 = vset.pattern.permute.xlu0 0
      %416 = vperm.xlu0 %415, %v406
      %v417 = vpop.permute.xlu0 %416
      %420 = vset.pattern.permute.xlu0 0
      %421 = vperm.xlu0 %420, %v407
      %v422 = vpop.permute.xlu0 %421
      %425 = vset.pattern.permute.xlu0 0
      %426 = vperm.xlu0 %425, %v408
      %v427 = vpop.permute.xlu0 %426
      %430 = vset.pattern.permute.xlu0 0
      %431 = vperm.xlu0 %430, %v409
      %v432 = vpop.permute.xlu0 %431
      %435 = vset.pattern.permute.xlu0 0
      %436 = vperm.xlu0 %435, %v410
      %v437 = vpop.permute.xlu0 %436
      %440 = vset.pattern.permute.xlu0 0
      %441 = vperm.xlu0 %440, %v411
      %v442 = vpop.permute.xlu0 %441
      %445 = vset.pattern.permute.xlu0 0
      %446 = vperm.xlu0 %445, %v412
      %v447 = vpop.permute.xlu0 %446
      %450 = vset.pattern.permute.xlu0 0
      %451 = vperm.xlu0 %450, %v413
      %v452 = vpop.permute.xlu0 %451
      %v462 = vunpack.c.l.b16 %v398
      %v463 = vunpack.c.l.b16 %v399
      %v464 = vunpack.c.l.b16 %v400
      %v465 = vunpack.c.l.b16 %v401
      %v466 = vunpack.c.l.b16 %v402
      %v467 = vunpack.c.l.b16 %v403
      %v468 = vunpack.c.l.b16 %v404
      %v469 = vunpack.c.l.b16 %v405
      %v470 = vpack.c.b16 %v463, %v462
      %v471 = vpack.c.b16 %v465, %v464
      %v472 = vpack.c.b16 %v467, %v466
      %v473 = vpack.c.b16 %v469, %v468
      %vm474 = vcmask 64512
      %v476 = vsel %vm474, %v470, 0
      %v479 = vsel %vm474, %v471, 0
      %v482 = vsel %vm474, %v472, 0
      %v485 = vsel %vm474, %v473, 0
      %vm487 = vcmask 1043456
      %v489 = vsel %vm487, %v396, 0
      %v492 = vsel %vm487, %v397, 0
      %494 = vmatprep.subr.bf16.mxu0 0
      %495 = vmatpush1.bf16.msra.mxu0 0
      %496 = vmatprep.subr.bf16.mxu0 0
      %497 = vmatpush1.bf16.msra.mxu0 0
      %498 = vmatprep.subr.bf16.mxu0 0
      %499 = vmatpush1.bf16.msra.mxu0 0
      %500 = vmatprep.subr.bf16.mxu0 0
      %501 = vmatpush1.bf16.msra.mxu0 0
      %502 = vmatprep.subr.bf16.mxu0 0
      %503 = vmatpush1.bf16.msra.mxu0 0
      %504 = vmatprep.subr.bf16.mxu0 0
      %505 = vmatpush1.bf16.msra.mxu0 0
      %506 = vmatprep.subr.bf16.mxu0 0
      %507 = vmatpush1.bf16.msra.mxu0 0
      %508 = vmatprep.subr.bf16.mxu0 %v492
      %509 = vmatpush1.bf16.msra.mxu0 %v489
      %510 = vmatprep.subr.bf16.mxu0 0
      %511 = vmatpush2.bf16.msra.mxu0 0
      %512 = vmatprep.subr.bf16.mxu0 0
      %513 = vmatpush2.bf16.msra.mxu0 0
      %514 = vmatprep.subr.bf16.mxu0 0
      %515 = vmatpush2.bf16.msra.mxu0 0
      %516 = vmatprep.subr.bf16.mxu0 0
      %517 = vmatpush2.bf16.msra.mxu0 0
      %518 = vmatprep.subr.bf16.mxu0 0
      %519 = vmatpush2.bf16.msra.mxu0 0
      %520 = vmatprep.subr.bf16.mxu0 0
      %521 = vmatpush2.bf16.msra.mxu0 0
      %522 = vmatprep.subr.bf16.mxu0 0
      %523 = vmatpush2.bf16.msra.mxu0 0
      %524 = vmatprep.subr.bf16.mxu0 0
      %525 = vmatpush2.bf16.msra.mxu0 0
      %526 = vmatprep.mubr.bf16.mxu0 0
      %527 = vmatmul.mubr.bf16.gmra.mxu0 %v476
      %v528 = vpop.f32.mrf.mxu0
      %v529 = vadd.f32 %v417, %v528
      %v530 = vpop.f32.mrf.mxu0
      %v531 = vadd.f32 %v417, %v530
      %v532 = vpop.f32.mrf.mxu0
      %v533 = vadd.f32 %v422, %v532
      %v534 = vpop.f32.mrf.mxu0
      %v535 = vadd.f32 %v422, %v534
      %536 = vmatprep.mubr.bf16.mxu0 0
      %537 = vmatmul.mubr.bf16.gmra.mxu0 %v479
      %v538 = vpop.f32.mrf.mxu0
      %v539 = vadd.f32 %v427, %v538
      %v540 = vpop.f32.mrf.mxu0
      %v541 = vadd.f32 %v427, %v540
      %v542 = vpop.f32.mrf.mxu0
      %v543 = vadd.f32 %v432, %v542
      %v544 = vpop.f32.mrf.mxu0
      %v545 = vadd.f32 %v432, %v544
      %546 = vmatprep.mubr.bf16.mxu0 0
      %547 = vmatmul.mubr.bf16.gmra.mxu0 %v482
      %v548 = vpop.f32.mrf.mxu0
      %v549 = vadd.f32 %v437, %v548
      %v550 = vpop.f32.mrf.mxu0
      %v551 = vadd.f32 %v437, %v550
      %v552 = vpop.f32.mrf.mxu0
      %v553 = vadd.f32 %v442, %v552
      %v554 = vpop.f32.mrf.mxu0
      %v555 = vadd.f32 %v442, %v554
      %556 = vmatprep.mubr.bf16.mxu0 0
      %557 = vmatmul.mubr.bf16.gmra.mxu0 %v485
      %v558 = vpop.f32.mrf.mxu0
      %v559 = vadd.f32 %v447, %v558
      %v560 = vpop.f32.mrf.mxu0
      %v561 = vadd.f32 %v447, %v560
      %v562 = vpop.f32.mrf.mxu0
      %v563 = vadd.f32 %v452, %v562
      %v564 = vpop.f32.mrf.mxu0
      %v565 = vadd.f32 %v452, %v564
      %566 = vdwg.mxu0
      %v567 = vmax.f32 %v529, 0.0
      %v568 = vmax.f32 %v531, 0.0
      %v569 = vmax.f32 %v533, 0.0
      %v570 = vmax.f32 %v535, 0.0
      %v571 = vmax.f32 %v539, 0.0
      %v572 = vmax.f32 %v541, 0.0
      %v573 = vmax.f32 %v543, 0.0
      %v574 = vmax.f32 %v545, 0.0
      %v575 = vmax.f32 %v549, 0.0
      %v576 = vmax.f32 %v551, 0.0
      %v577 = vmax.f32 %v553, 0.0
      %v578 = vmax.f32 %v555, 0.0
      %v579 = vmax.f32 %v559, 0.0
      %v580 = vmax.f32 %v561, 0.0
      %v581 = vmax.f32 %v563, 0.0
      %v582 = vmax.f32 %v565, 0.0
      %v583 = vpack.c.bf16 %v569, %v567
      %v584 = vpack.c.bf16 %v570, %v568
      %v585 = vpack.c.bf16 %v573, %v571
      %v586 = vpack.c.bf16 %v574, %v572
      %v587 = vpack.c.bf16 %v577, %v575
      %v588 = vpack.c.bf16 %v578, %v576
      %v589 = vpack.c.bf16 %v581, %v579
      %v590 = vpack.c.bf16 %v582, %v580
      %v591 = vld [vmem:[%s3] sm:$0xf]
      %v592 = vld [vmem:[%s3 + $0x4] sm:$0xf]
      %v593 = vld [vmem:[%s3 + $0x8] sm:$0xf]
      %v594 = vld [vmem:[%s3 + $0xc] sm:$0xf]
      %v595 = vld [vmem:[%s3 + $0x10] sm:$0xf]
      %v596 = vld [vmem:[%s3 + $0x14] sm:$0xf]
      %v597 = vld [vmem:[%s3 + $0x18] sm:$0xf]
      %v598 = vld [vmem:[%s3 + $0x1c] sm:$0xf]
      %v599 = vld [vmem:[%s3 + $0x20] sm:$0xf]
      %v600 = vld [vmem:[%s3 + $0x24] sm:$0xf]
      %v601 = vld [vmem:[%s3 + $0x28] sm:$0xf]
      %v602 = vld [vmem:[%s3 + $0x2c] sm:$0xf]
      %v603 = vld [vmem:[%s3 + $0x30] sm:$0xf]
      %v604 = vld [vmem:[%s3 + $0x34] sm:$0xf]
      %v605 = vld [vmem:[%s3 + $0x38] sm:$0xf]
      %v606 = vld [vmem:[%s3 + $0x3c] sm:$0xf]
      %v607 = vld [vmem:[%s4] sm:$0xff]
      %v608 = vld [vmem:[%s4 + $0x8] sm:$0xff]
      %v609 = vld [vmem:[%s4 + $0x10] sm:$0xff]
      %v610 = vld [vmem:[%s4 + $0x18] sm:$0xff]
      %v611 = vld [vmem:[%s4 + $0x20] sm:$0xff]
      %v612 = vld [vmem:[%s4 + $0x28] sm:$0xff]
      %v613 = vld [vmem:[%s4 + $0x30] sm:$0xff]
      %v614 = vld [vmem:[%s4 + $0x38] sm:$0xff]
      %v615 = vld [vmem:[%s4 + $0x40] sm:$0xff]
      %v616 = vld [vmem:[%s4 + $0x48] sm:$0xff]
      %v617 = vld [vmem:[%s4 + $0x50] sm:$0xff]
      %v618 = vld [vmem:[%s4 + $0x58] sm:$0xff]
      %v619 = vld [vmem:[%s4 + $0x60] sm:$0xff]
      %v620 = vld [vmem:[%s4 + $0x68] sm:$0xff]
      %v621 = vld [vmem:[%s4 + $0x70] sm:$0xff]
      %v622 = vld [vmem:[%s4 + $0x78] sm:$0xff]
      %624 = vset.pattern.permute.xlu0 0
      %625 = vperm.xlu0 %624, %v607
      %v626 = vpop.permute.xlu0 %625
      %629 = vset.pattern.permute.xlu0 0
      %630 = vperm.xlu0 %629, %v608
      %v631 = vpop.permute.xlu0 %630
      %634 = vset.pattern.permute.xlu0 0
      %635 = vperm.xlu0 %634, %v609
      %v636 = vpop.permute.xlu0 %635
      %639 = vset.pattern.permute.xlu0 0
      %640 = vperm.xlu0 %639, %v610
      %v641 = vpop.permute.xlu0 %640
      %644 = vset.pattern.permute.xlu0 0
      %645 = vperm.xlu0 %644, %v611
      %v646 = vpop.permute.xlu0 %645
      %649 = vset.pattern.permute.xlu0 0
      %650 = vperm.xlu0 %649, %v612
      %v651 = vpop.permute.xlu0 %650
      %654 = vset.pattern.permute.xlu0 0
      %655 = vperm.xlu0 %654, %v613
      %v656 = vpop.permute.xlu0 %655
      %659 = vset.pattern.permute.xlu0 0
      %660 = vperm.xlu0 %659, %v614
      %v661 = vpop.permute.xlu0 %660
      %664 = vset.pattern.permute.xlu0 0
      %665 = vperm.xlu0 %664, %v615
      %v666 = vpop.permute.xlu0 %665
      %669 = vset.pattern.permute.xlu0 0
      %670 = vperm.xlu0 %669, %v616
      %v671 = vpop.permute.xlu0 %670
      %674 = vset.pattern.permute.xlu0 0
      %675 = vperm.xlu0 %674, %v617
      %v676 = vpop.permute.xlu0 %675
      %679 = vset.pattern.permute.xlu0 0
      %680 = vperm.xlu0 %679, %v618
      %v681 = vpop.permute.xlu0 %680
      %684 = vset.pattern.permute.xlu0 0
      %685 = vperm.xlu0 %684, %v619
      %v686 = vpop.permute.xlu0 %685
      %689 = vset.pattern.permute.xlu0 0
      %690 = vperm.xlu0 %689, %v620
      %v691 = vpop.permute.xlu0 %690
      %694 = vset.pattern.permute.xlu0 0
      %695 = vperm.xlu0 %694, %v621
      %v696 = vpop.permute.xlu0 %695
      %699 = vset.pattern.permute.xlu0 0
      %700 = vperm.xlu0 %699, %v622
      %v701 = vpop.permute.xlu0 %700
      %v719 = vunpack.c.l.b16 %v591
      %v720 = vunpack.c.l.b16 %v592
      %v721 = vunpack.c.l.b16 %v593
      %v722 = vunpack.c.l.b16 %v594
      %v723 = vunpack.c.l.b16 %v595
      %v724 = vunpack.c.l.b16 %v596
      %v725 = vunpack.c.l.b16 %v597
      %v726 = vunpack.c.l.b16 %v598
      %v727 = vunpack.c.l.b16 %v599
      %v728 = vunpack.c.l.b16 %v600
      %v729 = vunpack.c.l.b16 %v601
      %v730 = vunpack.c.l.b16 %v602
      %v731 = vunpack.c.l.b16 %v603
      %v732 = vunpack.c.l.b16 %v604
      %v733 = vunpack.c.l.b16 %v605
      %v734 = vunpack.c.l.b16 %v606
      %v735 = vpack.c.b16 %v720, %v719
      %v736 = vpack.c.b16 %v722, %v721
      %v737 = vpack.c.b16 %v724, %v723
      %v738 = vpack.c.b16 %v726, %v725
      %v739 = vpack.c.b16 %v728, %v727
      %v740 = vpack.c.b16 %v730, %v729
      %v741 = vpack.c.b16 %v732, %v731
      %v742 = vpack.c.b16 %v734, %v733
      %vm743 = vcmask 523264
      %v745 = vsel %vm743, %v735, 0
      %v748 = vsel %vm743, %v736, 0
      %v751 = vsel %vm743, %v737, 0
      %v754 = vsel %vm743, %v738, 0
      %v757 = vsel %vm743, %v739, 0
      %v760 = vsel %vm743, %v740, 0
      %v763 = vsel %vm743, %v741, 0
      %v766 = vsel %vm743, %v742, 0
      %768 = vmatprep.subr.bf16.mxu0 0
      %769 = vmatpush1.bf16.msra.mxu0 0
      %770 = vmatprep.subr.bf16.mxu0 0
      %771 = vmatpush1.bf16.msra.mxu0 0
      %772 = vmatprep.subr.bf16.mxu0 0
      %773 = vmatpush1.bf16.msra.mxu0 0
      %774 = vmatprep.subr.bf16.mxu0 0
      %775 = vmatpush1.bf16.msra.mxu0 0
      %776 = vmatprep.subr.bf16.mxu0 %v590
      %777 = vmatpush1.bf16.msra.mxu0 %v589
      %778 = vmatprep.subr.bf16.mxu0 %v588
      %779 = vmatpush1.bf16.msra.mxu0 %v587
      %780 = vmatprep.subr.bf16.mxu0 %v586
      %781 = vmatpush1.bf16.msra.mxu0 %v585
      %782 = vmatprep.subr.bf16.mxu0 %v584
      %783 = vmatpush1.bf16.msra.mxu0 %v583
      %784 = vmatprep.subr.bf16.mxu0 0
      %785 = vmatpush2.bf16.msra.mxu0 0
      %786 = vmatprep.subr.bf16.mxu0 0
      %787 = vmatpush2.bf16.msra.mxu0 0
      %788 = vmatprep.subr.bf16.mxu0 0
      %789 = vmatpush2.bf16.msra.mxu0 0
      %790 = vmatprep.subr.bf16.mxu0 0
      %791 = vmatpush2.bf16.msra.mxu0 0
      %792 = vmatprep.subr.bf16.mxu0 0
      %793 = vmatpush2.bf16.msra.mxu0 0
      %794 = vmatprep.subr.bf16.mxu0 0
      %795 = vmatpush2.bf16.msra.mxu0 0
      %796 = vmatprep.subr.bf16.mxu0 0
      %797 = vmatpush2.bf16.msra.mxu0 0
      %798 = vmatprep.subr.bf16.mxu0 0
      %799 = vmatpush2.bf16.msra.mxu0 0
      %800 = vmatprep.mubr.bf16.mxu0 0
      %801 = vmatmul.mubr.bf16.gmra.mxu0 %v745
      %v802 = vpop.f32.mrf.mxu0
      %v803 = vadd.f32 %v626, %v802
      %v804 = vpop.f32.mrf.mxu0
      %v805 = vadd.f32 %v626, %v804
      %v806 = vpop.f32.mrf.mxu0
      %v807 = vadd.f32 %v631, %v806
      %v808 = vpop.f32.mrf.mxu0
      %v809 = vadd.f32 %v631, %v808
      %810 = vmatprep.mubr.bf16.mxu0 0
      %811 = vmatmul.mubr.bf16.gmra.mxu0 %v748
      %v812 = vpop.f32.mrf.mxu0
      %v813 = vadd.f32 %v636, %v812
      %v814 = vpop.f32.mrf.mxu0
      %v815 = vadd.f32 %v636, %v814
      %v816 = vpop.f32.mrf.mxu0
      %v817 = vadd.f32 %v641, %v816
      %v818 = vpop.f32.mrf.mxu0
      %v819 = vadd.f32 %v641, %v818
      %820 = vmatprep.mubr.bf16.mxu0 0
      %821 = vmatmul.mubr.bf16.gmra.mxu0 %v751
      %v822 = vpop.f32.mrf.mxu0
      %v823 = vadd.f32 %v646, %v822
      %v824 = vpop.f32.mrf.mxu0
      %v825 = vadd.f32 %v646, %v824
      %v826 = vpop.f32.mrf.mxu0
      %v827 = vadd.f32 %v651, %v826
      %v828 = vpop.f32.mrf.mxu0
      %v829 = vadd.f32 %v651, %v828
      %830 = vmatprep.mubr.bf16.mxu0 0
      %831 = vmatmul.mubr.bf16.gmra.mxu0 %v754
      %v832 = vpop.f32.mrf.mxu0
      %v833 = vadd.f32 %v656, %v832
      %v834 = vpop.f32.mrf.mxu0
      %v835 = vadd.f32 %v656, %v834
      %v836 = vpop.f32.mrf.mxu0
      %v837 = vadd.f32 %v661, %v836
      %v838 = vpop.f32.mrf.mxu0
      %v839 = vadd.f32 %v661, %v838
      %840 = vmatprep.mubr.bf16.mxu0 0
      %841 = vmatmul.mubr.bf16.gmra.mxu0 %v757
      %v842 = vpop.f32.mrf.mxu0
      %v843 = vadd.f32 %v666, %v842
      %v844 = vpop.f32.mrf.mxu0
      %v845 = vadd.f32 %v666, %v844
      %v846 = vpop.f32.mrf.mxu0
      %v847 = vadd.f32 %v671, %v846
      %v848 = vpop.f32.mrf.mxu0
      %v849 = vadd.f32 %v671, %v848
      %850 = vmatprep.mubr.bf16.mxu0 0
      %851 = vmatmul.mubr.bf16.gmra.mxu0 %v760
      %v852 = vpop.f32.mrf.mxu0
      %v853 = vadd.f32 %v676, %v852
      %v854 = vpop.f32.mrf.mxu0
      %v855 = vadd.f32 %v676, %v854
      %v856 = vpop.f32.mrf.mxu0
      %v857 = vadd.f32 %v681, %v856
      %v858 = vpop.f32.mrf.mxu0
      %v859 = vadd.f32 %v681, %v858
      %860 = vmatprep.mubr.bf16.mxu0 0
      %861 = vmatmul.mubr.bf16.gmra.mxu0 %v763
      %v862 = vpop.f32.mrf.mxu0
      %v863 = vadd.f32 %v686, %v862
      %v864 = vpop.f32.mrf.mxu0
      %v865 = vadd.f32 %v686, %v864
      %v866 = vpop.f32.mrf.mxu0
      %v867 = vadd.f32 %v691, %v866
      %v868 = vpop.f32.mrf.mxu0
      %v869 = vadd.f32 %v691, %v868
      %870 = vmatprep.mubr.bf16.mxu0 0
      %871 = vmatmul.mubr.bf16.gmra.mxu0 %v766
      %v872 = vpop.f32.mrf.mxu0
      %v873 = vadd.f32 %v696, %v872
      %v874 = vpop.f32.mrf.mxu0
      %v875 = vadd.f32 %v696, %v874
      %v876 = vpop.f32.mrf.mxu0
      %v877 = vadd.f32 %v701, %v876
      %v878 = vpop.f32.mrf.mxu0
      %v879 = vadd.f32 %v701, %v878
      %880 = vdwg.mxu0
      %v881 = vmax.f32 %v803, 0.0
      %v882 = vmax.f32 %v805, 0.0
      %v883 = vmax.f32 %v807, 0.0
      %v884 = vmax.f32 %v809, 0.0
      %v885 = vmax.f32 %v813, 0.0
      %v886 = vmax.f32 %v815, 0.0
      %v887 = vmax.f32 %v817, 0.0
      %v888 = vmax.f32 %v819, 0.0
      %v889 = vmax.f32 %v823, 0.0
      %v890 = vmax.f32 %v825, 0.0
      %v891 = vmax.f32 %v827, 0.0
      %v892 = vmax.f32 %v829, 0.0
      %v893 = vmax.f32 %v833, 0.0
      %v894 = vmax.f32 %v835, 0.0
      %v895 = vmax.f32 %v837, 0.0
      %v896 = vmax.f32 %v839, 0.0
      %v897 = vmax.f32 %v843, 0.0
      %v898 = vmax.f32 %v845, 0.0
      %v899 = vmax.f32 %v847, 0.0
      %v900 = vmax.f32 %v849, 0.0
      %v901 = vmax.f32 %v853, 0.0
      %v902 = vmax.f32 %v855, 0.0
      %v903 = vmax.f32 %v857, 0.0
      %v904 = vmax.f32 %v859, 0.0
      %v905 = vmax.f32 %v863, 0.0
      %v906 = vmax.f32 %v865, 0.0
      %v907 = vmax.f32 %v867, 0.0
      %v908 = vmax.f32 %v869, 0.0
      %v909 = vmax.f32 %v873, 0.0
      %v910 = vmax.f32 %v875, 0.0
      %v911 = vmax.f32 %v877, 0.0
      %v912 = vmax.f32 %v879, 0.0
      %v913 = vpack.c.bf16 %v883, %v881
      %v914 = vpack.c.bf16 %v884, %v882
      %v915 = vpack.c.bf16 %v887, %v885
      %v916 = vpack.c.bf16 %v888, %v886
      %v917 = vpack.c.bf16 %v891, %v889
      %v918 = vpack.c.bf16 %v892, %v890
      %v919 = vpack.c.bf16 %v895, %v893
      %v920 = vpack.c.bf16 %v896, %v894
      %v921 = vpack.c.bf16 %v899, %v897
      %v922 = vpack.c.bf16 %v900, %v898
      %v923 = vpack.c.bf16 %v903, %v901
      %v924 = vpack.c.bf16 %v904, %v902
      %v925 = vpack.c.bf16 %v907, %v905
      %v926 = vpack.c.bf16 %v908, %v906
      %v927 = vpack.c.bf16 %v911, %v909
      %v928 = vpack.c.bf16 %v912, %v910
      %v929 = vld [vmem:[%s5] sm:$0xf]
      %v930 = vld [vmem:[%s5 + $0x4] sm:$0xf]
      %v931 = vld [vmem:[%s5 + $0x8] sm:$0xf]
      %v932 = vld [vmem:[%s5 + $0xc] sm:$0xf]
      %v933 = vld [vmem:[%s5 + $0x10] sm:$0xf]
      %v934 = vld [vmem:[%s5 + $0x14] sm:$0xf]
      %v935 = vld [vmem:[%s5 + $0x18] sm:$0xf]
      %v936 = vld [vmem:[%s5 + $0x1c] sm:$0xf]
      %v937 = vld [vmem:[%s5 + $0x20] sm:$0xf]
      %v938 = vld [vmem:[%s5 + $0x24] sm:$0xf]
      %v939 = vld [vmem:[%s5 + $0x28] sm:$0xf]
      %v940 = vld [vmem:[%s5 + $0x2c] sm:$0xf]
      %v941 = vld [vmem:[%s5 + $0x30] sm:$0xf]
      %v942 = vld [vmem:[%s5 + $0x34] sm:$0xf]
      %v943 = vld [vmem:[%s5 + $0x38] sm:$0xf]
      %v944 = vld [vmem:[%s5 + $0x3c] sm:$0xf]
      %v945 = vld [vmem:[%s6] sm:$0xff]
      %v946 = vld [vmem:[%s6 + $0x8] sm:$0xff]
      %v947 = vld [vmem:[%s6 + $0x10] sm:$0xff]
      %v948 = vld [vmem:[%s6 + $0x18] sm:$0xff]
      %v949 = vld [vmem:[%s6 + $0x20] sm:$0xff]
      %v950 = vld [vmem:[%s6 + $0x28] sm:$0xff]
      %v951 = vld [vmem:[%s6 + $0x30] sm:$0xff]
      %v952 = vld [vmem:[%s6 + $0x38] sm:$0xff]
      %v953 = vld [vmem:[%s6 + $0x40] sm:$0xff]
      %v954 = vld [vmem:[%s6 + $0x48] sm:$0xff]
      %v955 = vld [vmem:[%s6 + $0x50] sm:$0xff]
      %v956 = vld [vmem:[%s6 + $0x58] sm:$0xff]
      %v957 = vld [vmem:[%s6 + $0x60] sm:$0xff]
      %v958 = vld [vmem:[%s6 + $0x68] sm:$0xff]
      %v959 = vld [vmem:[%s6 + $0x70] sm:$0xff]
      %v960 = vld [vmem:[%s6 + $0x78] sm:$0xff]
      %962 = vset.pattern.permute.xlu0 0
      %963 = vperm.xlu0 %962, %v945
      %v964 = vpop.permute.xlu0 %963
      %967 = vset.pattern.permute.xlu0 0
      %968 = vperm.xlu0 %967, %v946
      %v969 = vpop.permute.xlu0 %968
      %972 = vset.pattern.permute.xlu0 0
      %973 = vperm.xlu0 %972, %v947
      %v974 = vpop.permute.xlu0 %973
      %977 = vset.pattern.permute.xlu0 0
      %978 = vperm.xlu0 %977, %v948
      %v979 = vpop.permute.xlu0 %978
      %982 = vset.pattern.permute.xlu0 0
      %983 = vperm.xlu0 %982, %v949
      %v984 = vpop.permute.xlu0 %983
      %987 = vset.pattern.permute.xlu0 0
      %988 = vperm.xlu0 %987, %v950
      %v989 = vpop.permute.xlu0 %988
      %992 = vset.pattern.permute.xlu0 0
      %993 = vperm.xlu0 %992, %v951
      %v994 = vpop.permute.xlu0 %993
      %997 = vset.pattern.permute.xlu0 0
      %998 = vperm.xlu0 %997, %v952
      %v999 = vpop.permute.xlu0 %998
      %1002 = vset.pattern.permute.xlu0 0
      %1003 = vperm.xlu0 %1002, %v953
      %v1004 = vpop.permute.xlu0 %1003
      %1007 = vset.pattern.permute.xlu0 0
      %1008 = vperm.xlu0 %1007, %v954
      %v1009 = vpop.permute.xlu0 %1008
      %1012 = vset.pattern.permute.xlu0 0
      %1013 = vperm.xlu0 %1012, %v955
      %v1014 = vpop.permute.xlu0 %1013
      %1017 = vset.pattern.permute.xlu0 0
      %1018 = vperm.xlu0 %1017, %v956
      %v1019 = vpop.permute.xlu0 %1018
      %1022 = vset.pattern.permute.xlu0 0
      %1023 = vperm.xlu0 %1022, %v957
      %v1024 = vpop.permute.xlu0 %1023
      %1027 = vset.pattern.permute.xlu0 0
      %1028 = vperm.xlu0 %1027, %v958
      %v1029 = vpop.permute.xlu0 %1028
      %1032 = vset.pattern.permute.xlu0 0
      %1033 = vperm.xlu0 %1032, %v959
      %v1034 = vpop.permute.xlu0 %1033
      %1037 = vset.pattern.permute.xlu0 0
      %1038 = vperm.xlu0 %1037, %v960
      %v1039 = vpop.permute.xlu0 %1038
      %v1057 = vunpack.c.l.b16 %v929
      %v1058 = vunpack.c.l.b16 %v930
      %v1059 = vunpack.c.l.b16 %v931
      %v1060 = vunpack.c.l.b16 %v932
      %v1061 = vunpack.c.l.b16 %v933
      %v1062 = vunpack.c.l.b16 %v934
      %v1063 = vunpack.c.l.b16 %v935
      %v1064 = vunpack.c.l.b16 %v936
      %v1065 = vunpack.c.l.b16 %v937
      %v1066 = vunpack.c.l.b16 %v938
      %v1067 = vunpack.c.l.b16 %v939
      %v1068 = vunpack.c.l.b16 %v940
      %v1069 = vunpack.c.l.b16 %v941
      %v1070 = vunpack.c.l.b16 %v942
      %v1071 = vunpack.c.l.b16 %v943
      %v1072 = vunpack.c.l.b16 %v944
      %v1073 = vpack.c.b16 %v1058, %v1057
      %v1074 = vpack.c.b16 %v1060, %v1059
      %v1075 = vpack.c.b16 %v1062, %v1061
      %v1076 = vpack.c.b16 %v1064, %v1063
      %v1077 = vpack.c.b16 %v1066, %v1065
      %v1078 = vpack.c.b16 %v1068, %v1067
      %v1079 = vpack.c.b16 %v1070, %v1069
      %v1080 = vpack.c.b16 %v1072, %v1071
      %1089 = vmatprep.subr.bf16.mxu0 %v928
      %1090 = vmatpush1.bf16.msra.mxu0 %v927
      %1091 = vmatprep.subr.bf16.mxu0 %v926
      %1092 = vmatpush1.bf16.msra.mxu0 %v925
      %1093 = vmatprep.subr.bf16.mxu0 %v924
      %1094 = vmatpush1.bf16.msra.mxu0 %v923
      %1095 = vmatprep.subr.bf16.mxu0 %v922
      %1096 = vmatpush1.bf16.msra.mxu0 %v921
      %1097 = vmatprep.subr.bf16.mxu0 %v920
      %1098 = vmatpush1.bf16.msra.mxu0 %v919
      %1099 = vmatprep.subr.bf16.mxu0 %v918
      %1100 = vmatpush1.bf16.msra.mxu0 %v917
      %1101 = vmatprep.subr.bf16.mxu0 %v916
      %1102 = vmatpush1.bf16.msra.mxu0 %v915
      %1103 = vmatprep.subr.bf16.mxu0 %v914
      %1104 = vmatpush1.bf16.msra.mxu0 %v913
      %1105 = vmatprep.subr.bf16.mxu0 0
      %1106 = vmatpush2.bf16.msra.mxu0 0
      %1107 = vmatprep.subr.bf16.mxu0 0
      %1108 = vmatpush2.bf16.msra.mxu0 0
      %1109 = vmatprep.subr.bf16.mxu0 0
      %1110 = vmatpush2.bf16.msra.mxu0 0
      %1111 = vmatprep.subr.bf16.mxu0 0
      %1112 = vmatpush2.bf16.msra.mxu0 0
      %1113 = vmatprep.subr.bf16.mxu0 0
      %1114 = vmatpush2.bf16.msra.mxu0 0
      %1115 = vmatprep.subr.bf16.mxu0 0
      %1116 = vmatpush2.bf16.msra.mxu0 0
      %1117 = vmatprep.subr.bf16.mxu0 0
      %1118 = vmatpush2.bf16.msra.mxu0 0
      %1119 = vmatprep.subr.bf16.mxu0 0
      %1120 = vmatpush2.bf16.msra.mxu0 0
      %1121 = vmatprep.mubr.bf16.mxu0 0
      %1122 = vmatmul.mubr.bf16.gmra.mxu0 %v1073
      %v1123 = vpop.f32.mrf.mxu0
      %v1124 = vadd.f32 %v964, %v1123
      %v1125 = vpop.f32.mrf.mxu0
      %v1126 = vadd.f32 %v964, %v1125
      %v1127 = vpop.f32.mrf.mxu0
      %v1128 = vadd.f32 %v969, %v1127
      %v1129 = vpop.f32.mrf.mxu0
      %v1130 = vadd.f32 %v969, %v1129
      %1131 = vmatprep.mubr.bf16.mxu0 0
      %1132 = vmatmul.mubr.bf16.gmra.mxu0 %v1074
      %v1133 = vpop.f32.mrf.mxu0
      %v1134 = vadd.f32 %v974, %v1133
      %v1135 = vpop.f32.mrf.mxu0
      %v1136 = vadd.f32 %v974, %v1135
      %v1137 = vpop.f32.mrf.mxu0
      %v1138 = vadd.f32 %v979, %v1137
      %v1139 = vpop.f32.mrf.mxu0
      %v1140 = vadd.f32 %v979, %v1139
      %1141 = vmatprep.mubr.bf16.mxu0 0
      %1142 = vmatmul.mubr.bf16.gmra.mxu0 %v1075
      %v1143 = vpop.f32.mrf.mxu0
      %v1144 = vadd.f32 %v984, %v1143
      %v1145 = vpop.f32.mrf.mxu0
      %v1146 = vadd.f32 %v984, %v1145
      %v1147 = vpop.f32.mrf.mxu0
      %v1148 = vadd.f32 %v989, %v1147
      %v1149 = vpop.f32.mrf.mxu0
      %v1150 = vadd.f32 %v989, %v1149
      %1151 = vmatprep.mubr.bf16.mxu0 0
      %1152 = vmatmul.mubr.bf16.gmra.mxu0 %v1076
      %v1153 = vpop.f32.mrf.mxu0
      %v1154 = vadd.f32 %v994, %v1153
      %v1155 = vpop.f32.mrf.mxu0
      %v1156 = vadd.f32 %v994, %v1155
      %v1157 = vpop.f32.mrf.mxu0
      %v1158 = vadd.f32 %v999, %v1157
      %v1159 = vpop.f32.mrf.mxu0
      %v1160 = vadd.f32 %v999, %v1159
      %1161 = vmatprep.mubr.bf16.mxu0 0
      %1162 = vmatmul.mubr.bf16.gmra.mxu0 %v1077
      %v1163 = vpop.f32.mrf.mxu0
      %v1164 = vadd.f32 %v1004, %v1163
      %v1165 = vpop.f32.mrf.mxu0
      %v1166 = vadd.f32 %v1004, %v1165
      %v1167 = vpop.f32.mrf.mxu0
      %v1168 = vadd.f32 %v1009, %v1167
      %v1169 = vpop.f32.mrf.mxu0
      %v1170 = vadd.f32 %v1009, %v1169
      %1171 = vmatprep.mubr.bf16.mxu0 0
      %1172 = vmatmul.mubr.bf16.gmra.mxu0 %v1078
      %v1173 = vpop.f32.mrf.mxu0
      %v1174 = vadd.f32 %v1014, %v1173
      %v1175 = vpop.f32.mrf.mxu0
      %v1176 = vadd.f32 %v1014, %v1175
      %v1177 = vpop.f32.mrf.mxu0
      %v1178 = vadd.f32 %v1019, %v1177
      %v1179 = vpop.f32.mrf.mxu0
      %v1180 = vadd.f32 %v1019, %v1179
      %1181 = vmatprep.mubr.bf16.mxu0 0
      %1182 = vmatmul.mubr.bf16.gmra.mxu0 %v1079
      %v1183 = vpop.f32.mrf.mxu0
      %v1184 = vadd.f32 %v1024, %v1183
      %v1185 = vpop.f32.mrf.mxu0
      %v1186 = vadd.f32 %v1024, %v1185
      %v1187 = vpop.f32.mrf.mxu0
      %v1188 = vadd.f32 %v1029, %v1187
      %v1189 = vpop.f32.mrf.mxu0
      %v1190 = vadd.f32 %v1029, %v1189
      %1191 = vmatprep.mubr.bf16.mxu0 0
      %1192 = vmatmul.mubr.bf16.gmra.mxu0 %v1080
      %v1193 = vpop.f32.mrf.mxu0
      %v1194 = vadd.f32 %v1034, %v1193
      %v1195 = vpop.f32.mrf.mxu0
      %v1196 = vadd.f32 %v1034, %v1195
      %v1197 = vpop.f32.mrf.mxu0
      %v1198 = vadd.f32 %v1039, %v1197
      %v1199 = vpop.f32.mrf.mxu0
      %v1200 = vadd.f32 %v1039, %v1199
      %1201 = vdwg.mxu0
      %v1202 = vmax.f32 %v1124, 0.0
      %v1203 = vmax.f32 %v1126, 0.0
      %v1204 = vmax.f32 %v1128, 0.0
      %v1205 = vmax.f32 %v1130, 0.0
      %v1206 = vmax.f32 %v1134, 0.0
      %v1207 = vmax.f32 %v1136, 0.0
      %v1208 = vmax.f32 %v1138, 0.0
      %v1209 = vmax.f32 %v1140, 0.0
      %v1210 = vmax.f32 %v1144, 0.0
      %v1211 = vmax.f32 %v1146, 0.0
      %v1212 = vmax.f32 %v1148, 0.0
      %v1213 = vmax.f32 %v1150, 0.0
      %v1214 = vmax.f32 %v1154, 0.0
      %v1215 = vmax.f32 %v1156, 0.0
      %v1216 = vmax.f32 %v1158, 0.0
      %v1217 = vmax.f32 %v1160, 0.0
      %v1218 = vmax.f32 %v1164, 0.0
      %v1219 = vmax.f32 %v1166, 0.0
      %v1220 = vmax.f32 %v1168, 0.0
      %v1221 = vmax.f32 %v1170, 0.0
      %v1222 = vmax.f32 %v1174, 0.0
      %v1223 = vmax.f32 %v1176, 0.0
      %v1224 = vmax.f32 %v1178, 0.0
      %v1225 = vmax.f32 %v1180, 0.0
      %v1226 = vmax.f32 %v1184, 0.0
      %v1227 = vmax.f32 %v1186, 0.0
      %v1228 = vmax.f32 %v1188, 0.0
      %v1229 = vmax.f32 %v1190, 0.0
      %v1230 = vmax.f32 %v1194, 0.0
      %v1231 = vmax.f32 %v1196, 0.0
      %v1232 = vmax.f32 %v1198, 0.0
      %v1233 = vmax.f32 %v1200, 0.0
      %v1234 = vpack.c.bf16 %v1204, %v1202
      %v1235 = vpack.c.bf16 %v1205, %v1203
      %v1236 = vpack.c.bf16 %v1208, %v1206
      %v1237 = vpack.c.bf16 %v1209, %v1207
      %v1238 = vpack.c.bf16 %v1212, %v1210
      %v1239 = vpack.c.bf16 %v1213, %v1211
      %v1240 = vpack.c.bf16 %v1216, %v1214
      %v1241 = vpack.c.bf16 %v1217, %v1215
      %v1242 = vpack.c.bf16 %v1220, %v1218
      %v1243 = vpack.c.bf16 %v1221, %v1219
      %v1244 = vpack.c.bf16 %v1224, %v1222
      %v1245 = vpack.c.bf16 %v1225, %v1223
      %v1246 = vpack.c.bf16 %v1228, %v1226
      %v1247 = vpack.c.bf16 %v1229, %v1227
      %v1248 = vpack.c.bf16 %v1232, %v1230
      %v1249 = vpack.c.bf16 %v1233, %v1231
      %v1250 = vld [vmem:[%s7] sm:$0xf]
      %v1251 = vld [vmem:[%s7 + $0x4] sm:$0xf]
      %v1252 = vld [vmem:[%s7 + $0x8] sm:$0xf]
      %v1253 = vld [vmem:[%s7 + $0xc] sm:$0xf]
      %v1254 = vld [vmem:[%s8] sm:$0xff]
      %v1255 = vld [vmem:[%s8 + $0x8] sm:$0xff]
      %v1256 = vld [vmem:[%s8 + $0x10] sm:$0xff]
      %v1257 = vld [vmem:[%s8 + $0x18] sm:$0xff]
      %1259 = vset.pattern.permute.xlu0 0
      %1260 = vperm.xlu0 %1259, %v1254
      %v1261 = vpop.permute.xlu0 %1260
      %1264 = vset.pattern.permute.xlu0 0
      %1265 = vperm.xlu0 %1264, %v1255
      %v1266 = vpop.permute.xlu0 %1265
      %1269 = vset.pattern.permute.xlu0 0
      %1270 = vperm.xlu0 %1269, %v1256
      %v1271 = vpop.permute.xlu0 %1270
      %1274 = vset.pattern.permute.xlu0 0
      %1275 = vperm.xlu0 %1274, %v1257
      %v1276 = vpop.permute.xlu0 %1275
      %v1282 = vunpack.c.l.b16 %v1250
      %v1283 = vunpack.c.l.b16 %v1251
      %v1284 = vunpack.c.l.b16 %v1252
      %v1285 = vunpack.c.l.b16 %v1253
      %v1286 = vpack.c.b16 %v1283, %v1282
      %v1287 = vpack.c.b16 %v1285, %v1284
      %1290 = vmatprep.subr.bf16.mxu0 %v1249
      %1291 = vmatpush1.bf16.msra.mxu0 %v1248
      %1292 = vmatprep.subr.bf16.mxu0 %v1247
      %1293 = vmatpush1.bf16.msra.mxu0 %v1246
      %1294 = vmatprep.subr.bf16.mxu0 %v1245
      %1295 = vmatpush1.bf16.msra.mxu0 %v1244
      %1296 = vmatprep.subr.bf16.mxu0 %v1243
      %1297 = vmatpush1.bf16.msra.mxu0 %v1242
      %1298 = vmatprep.subr.bf16.mxu0 %v1241
      %1299 = vmatpush1.bf16.msra.mxu0 %v1240
      %1300 = vmatprep.subr.bf16.mxu0 %v1239
      %1301 = vmatpush1.bf16.msra.mxu0 %v1238
      %1302 = vmatprep.subr.bf16.mxu0 %v1237
      %1303 = vmatpush1.bf16.msra.mxu0 %v1236
      %1304 = vmatprep.subr.bf16.mxu0 %v1235
      %1305 = vmatpush1.bf16.msra.mxu0 %v1234
      %1306 = vmatprep.subr.bf16.mxu0 0
      %1307 = vmatpush2.bf16.msra.mxu0 0
      %1308 = vmatprep.subr.bf16.mxu0 0
      %1309 = vmatpush2.bf16.msra.mxu0 0
      %1310 = vmatprep.subr.bf16.mxu0 0
      %1311 = vmatpush2.bf16.msra.mxu0 0
      %1312 = vmatprep.subr.bf16.mxu0 0
      %1313 = vmatpush2.bf16.msra.mxu0 0
      %1314 = vmatprep.subr.bf16.mxu0 0
      %1315 = vmatpush2.bf16.msra.mxu0 0
      %1316 = vmatprep.subr.bf16.mxu0 0
      %1317 = vmatpush2.bf16.msra.mxu0 0
      %1318 = vmatprep.subr.bf16.mxu0 0
      %1319 = vmatpush2.bf16.msra.mxu0 0
      %1320 = vmatprep.subr.bf16.mxu0 0
      %1321 = vmatpush2.bf16.msra.mxu0 0
      %1322 = vmatprep.mubr.bf16.mxu0 0
      %1323 = vmatmul.mubr.bf16.gmra.mxu0 %v1286
      %v1324 = vpop.f32.mrf.mxu0
      %v1325 = vadd.f32 %v1261, %v1324
      %v1326 = vpop.f32.mrf.mxu0
      %v1327 = vadd.f32 %v1261, %v1326
      %v1328 = vpop.f32.mrf.mxu0
      %v1329 = vadd.f32 %v1266, %v1328
      %v1330 = vpop.f32.mrf.mxu0
      %v1331 = vadd.f32 %v1266, %v1330
      %1332 = vmatprep.mubr.bf16.mxu0 0
      %1333 = vmatmul.mubr.bf16.gmra.mxu0 %v1287
      %v1334 = vpop.f32.mrf.mxu0
      %v1335 = vadd.f32 %v1271, %v1334
      %v1336 = vpop.f32.mrf.mxu0
      %v1337 = vadd.f32 %v1271, %v1336
      %v1338 = vpop.f32.mrf.mxu0
      %v1339 = vadd.f32 %v1276, %v1338
      %v1340 = vpop.f32.mrf.mxu0
      %v1341 = vadd.f32 %v1276, %v1340
      %1342 = vdwg.mxu0
      %v1343 = vmax.f32 %v1325, 0.0
      %v1344 = vmax.f32 %v1327, 0.0
      %v1345 = vmax.f32 %v1329, 0.0
      %v1346 = vmax.f32 %v1331, 0.0
      %v1347 = vmax.f32 %v1335, 0.0
      %v1348 = vmax.f32 %v1337, 0.0
      %v1349 = vmax.f32 %v1339, 0.0
      %v1350 = vmax.f32 %v1341, 0.0
      %v1351 = vmax.f32 %v1343, %v1344
      %v1352 = vmax.f32 %v1345, %v1346
      %v1353 = vmax.f32 %v1347, %v1348
      %v1354 = vmax.f32 %v1349, %v1350
      %v1355 = vld [vmem:[#allocation2] sm:$0xff]
      %v1356 = vld [vmem:[#allocation2 + $0x8] sm:$0xff]
      %v1357 = vld [vmem:[#allocation2 + $0x10] sm:$0xff]
      %v1358 = vld [vmem:[#allocation2 + $0x18] sm:$0xff]
      %v1359 = vmax.f32 %v1355, %v1351
      %v1360 = vmax.f32 %v1356, %v1352
      %v1361 = vmax.f32 %v1357, %v1353
      %v1362 = vmax.f32 %v1358, %v1354
      %1363 = vst [vmem:[#allocation2] sm:$0xff] %v1359
      %1364 = vst [vmem:[#allocation2 + $0x8] sm:$0xff] %v1360
      %1365 = vst [vmem:[#allocation2 + $0x10] sm:$0xff] %v1361
      %1366 = vst [vmem:[#allocation2 + $0x18] sm:$0xff] %v1362
      // Predicated region
      $region61: #{simple_pc_encoder.1} parent=55 // pred_check
        %p1367 = pneg %p386
      $region62: #{simple_pc_encoder.1} parent=55 // pred_check_branch
        %1369 = sbr.rel (%p1367) target = $region64
      $region63: #{simple_pc_encoder.1} parent=55 // pred_region
        %v1370 = vld [vmem:[#allocation2] sm:$0xff]
        %v1371 = vld [vmem:[#allocation2 + $0x8] sm:$0xff]
        %v1372 = vld [vmem:[#allocation2 + $0x10] sm:$0xff]
        %v1373 = vld [vmem:[#allocation2 + $0x18] sm:$0xff]
        %1374 = vst [vmem:[%s384] sm:$0xff] %v1370
        %1375 = vst [vmem:[%s384 + $0x8] sm:$0xff] %v1371
        %1376 = vst [vmem:[%s384 + $0x10] sm:$0xff] %v1372
        %1377 = vst [vmem:[%s384 + $0x18] sm:$0xff] %v1373
      $region64: #{simple_pc_encoder.1} parent=55 // pred_fallthru
        _
      %p1378 = scmp.lt.s32.totalorder %s25, 1
      %s1379 = scalar_select %p1378, %s25, 1
      %p1380 = scmp.lt.s32.totalorder %s26, 0
      %s1381 = scalar_select %p1380, %s26, 0
      %s1382 = smul.addr %s1381, 4
      %s1383 = smul.addr %s1379, 4
      %s1384 = sadd.s32 %s1382, %s1383
      %s1385 = smul.addr %s1384, 8
      %s1386 = scalar_lea.vmem %s9, %s1385
      // Predicated region
      $region65: #{simple_pc_encoder.1} parent=55 // pred_check
        %p1387 = pneg %p257
      $region66: #{simple_pc_encoder.1} parent=55 // pred_check_branch
        %1389 = sbr.rel (%p1387) target = $region68
      $region67: #{simple_pc_encoder.1} parent=55 // pred_region
        _
      $region68: #{simple_pc_encoder.1} parent=55 // pred_fallthru
        _
    $region56: #{simple_pc_encoder.1} parent=5 // pred_fallthru
      _
    %p1390 = scmp.le.s32.totalorder 2, %s15
    // Predicated region
    $region69: #{simple_pc_encoder.1} parent=5 // pred_check
      %p1391 = pneg %p1390
    $region70: #{simple_pc_encoder.1} parent=5 // pred_check_branch
      %1393 = sbr.rel (%p1391) target = $region72
    $region71: #{simple_pc_encoder.1} parent=5 // pred_region
      %s1394 = ssub.s32 %s15, 2
      // Predicated region
      $region73: #{simple_pc_encoder.1} parent=71 // pred_check
        %p1395 = pneg %p263
      $region74: #{simple_pc_encoder.1} parent=71 // pred_check_branch
        %1397 = sbr.rel (%p1395) target = $region76
      $region75: #{simple_pc_encoder.1} parent=71 // pred_region
        %p1398 = scmp.lt.s32.totalorder %s28, 1
        %s1399 = scalar_select %p1398, %s28, 1
        %p1400 = scmp.lt.s32.totalorder %s29, 0
        %s1401 = scalar_select %p1400, %s29, 0
        %s1402 = smul.addr %s1401, 4
        %s1403 = smul.addr %s1399, 4
        %s1404 = sadd.s32 %s1402, %s1403
        %s1405 = smul.addr %s1404, 8
        %s1406 = scalar_lea.vmem %s9, %s1405
      $region76: #{simple_pc_encoder.1} parent=71 // pred_fallthru
        _
    $region72: #{simple_pc_encoder.1} parent=5 // pred_fallthru
      _
  $region6: #{simple_pc_encoder.1} parent=0 // loop_footer
    %s19 = sadd.s32 1, %s15
  $region7: #{simple_pc_encoder.1} parent=0 // loop_footer_branch
    %14 = sbr.rel target = $region3
  $region8: #{simple_pc_encoder.1} parent=0 // loop_exit
    _

</llo_original>
